<compile_context>
chip_gen: v7x
topology: tpu7x:2x2x1
jax: 0.10.0
libtpu: 0.0.40
codegen_flags: <defaults>
</compile_context>

<pallas_src>
import functools

import jax
import jax.numpy as jnp
from jax import lax
from jax.experimental import pallas as pl
from jax.experimental.pallas import tpu as pltpu

# ----- module constants (synthetic, deterministic) -------------------------------
N_SPECIAL_TOKENS = 4
PAD = 0
NUM_SCALES = 8          # F : number of space2vec scales
NUM_DIRS = 3            # 3 grid-cell directions (0, 120, 240 deg)


# ---------------------------------------------------------------------------------
# Kernel
# ---------------------------------------------------------------------------------
def source_input_kernel(tok_ref, const_ref, wbig_ref, out_ref, *,
                        d_embed, vocab, six_f, k_pad):
    tile = tok_ref.shape[0]
    d4 = 4 * d_embed

    toks = tok_ref[...]                               # (tile, 8) f32, one DMA
    x = toks[:, 0:1]
    y = toks[:, 1:2]
    at = toks[:, 2:3]
    dt = toks[:, 3:4]
    rid = toks[:, 4:5].astype(jnp.int32)              # exact for ids < 2^24

    # packed constant rows
    pxx = const_ref[0:1, 0:k_pad]                     # px duplicated over both halves
    pyy = const_ref[1:2, 0:k_pad]
    phase = const_ref[2:3, 0:k_pad]                   # 0 | pi/2 -> cos via sin
    wt = const_ref[4:5, 0:d4]                         # wt in lanes [D,3D), else 0
    bt = const_ref[5:6, 0:d4]

    # ---- fused LHS lanes: [sin(ang) | sin(ang+pi/2)=cos | onehot(region) | 1 | 0] --
    lane_k = lax.broadcasted_iota(jnp.int32, (tile, k_pad), 1)
    ang = x * pxx + y * pyy + phase                   # single EUP sin slab below
    gather = ((lane_k - six_f == rid) | (lane_k == six_f + vocab)).astype(jnp.float32)
    lhs = jnp.where(lane_k < six_f, jnp.sin(ang), gather)

    # ---- one MXU matmul: space proj (+bias) -> lanes [0,D); region emb -> [3D,4D);
    #      middle 2D lanes are exactly zero (zero rhs columns). bf16 in, f32 acc. ----
    result = jnp.dot(lhs.astype(wbig_ref.dtype), wbig_ref[...],
                     preferred_element_type=jnp.float32)        # (tile, 4D)

    # ---- Time2Vec (arrival + departure), f32 on VPU/EUP, added into middle lanes ---
    lane_d = lax.broadcasted_iota(jnp.int32, (tile, d4), 1)
    is_arr = (lane_d >= d_embed) & (lane_d < 2 * d_embed)
    t_ang = jnp.where(is_arr, at, dt) * wt + bt       # zero outside the time lanes
    is_lin = (lane_d == d_embed) | (lane_d == 2 * d_embed)      # k == 0 lanes
    time_slab = jnp.where(is_lin, t_ang, jnp.sin(t_ang))        # sin(0)=0 elsewhere

    # ---- single lane-dense full-width store -----------------------------------------
    out_ref[...] = (result + time_slab).astype(out_ref.dtype)


# ---------------------------------------------------------------------------------
# One-time parameter packing (hoisted out of the per-call path)
# ---------------------------------------------------------------------------------
def _round_up(a, b):
    return ((a + b - 1) // b) * b


def pack_params(params, d_embed):
    """Build the fused RHS block matrix + the packed constant slab.  Call ONCE."""
    px, py, ws, bs, wt, bt, emb = params
    vocab = emb.shape[0]
    three_f = px.shape[1]
    six_f = 2 * three_f
    D = d_embed
    d4 = 4 * D

    assert vocab < (1 << 24), "region ids carried via f32 lanes must stay < 2^24"

    K = six_f + vocab + 1                              # [feat | onehot | ones]
    k_pad = _round_up(K, 128)
    # TODO(synk): beyond this threshold switch to scalar-prefetch + pl.Element gather.
    assert k_pad <= 2048, "fused one-hot path only used for small vocabularies"

    wbig = jnp.zeros((k_pad, d4), jnp.float32)
    wbig = wbig.at[0:six_f, 0:D].set(ws)                          # Space2Vec projection
    wbig = wbig.at[six_f:six_f + vocab, 3 * D:4 * D].set(emb)     # embedding gather
    wbig = wbig.at[six_f + vocab, 0:D].set(bs[0])                 # space bias row
    wbig = wbig.astype(jnp.bfloat16)                              # bf16 MXU inputs

    C = max(k_pad, d4)
    consts = jnp.zeros((8, C), jnp.float32)
    consts = consts.at[0, 0:three_f].set(px[0]).at[0, three_f:six_f].set(px[0])
    consts = consts.at[1, 0:three_f].set(py[0]).at[1, three_f:six_f].set(py[0])
    consts = consts.at[2, three_f:six_f].set(jnp.pi / 2)          # phase: cos = sin(+pi/2)
    consts = consts.at[4, D:2 * D].set(wt[0]).at[4, 2 * D:3 * D].set(wt[0])
    consts = consts.at[5, D:2 * D].set(bt[0]).at[5, 2 * D:3 * D].set(bt[0])

    meta = dict(d_embed=D, vocab=vocab, six_f=six_f, k_pad=k_pad)
    return wbig, consts, meta


def pack_tokens(region_id, x, y, arrival_time, departure_time):
    """Pack the 5 per-token scalar streams into one (N, 8) f32 slab (1 DMA/step)."""
    B, S = region_id.shape
    N = B * S
    zcol = jnp.zeros((N,), jnp.float32)
    return jnp.stack([x.reshape(N).astype(jnp.float32),
                      y.reshape(N).astype(jnp.float32),
                      arrival_time.reshape(N).astype(jnp.float32),
                      departure_time.reshape(N).astype(jnp.float32),
                      region_id.reshape(N).astype(jnp.float32),
                      zcol, zcol, zcol], axis=-1)                 # (N, 8)


# ---------------------------------------------------------------------------------
# Forward
# ---------------------------------------------------------------------------------
def _choose_tile(n, max_tile=1024):
    """Large tiles (low per-step overhead), multiple of 8, and >= 2 grid steps when
    the problem allows (v7x has 2 TensorCores to shard the 'parallel' axis over)."""
    n8 = _round_up(max(n, 8), 8)
    tile = min(max_tile, n8)
    if tile == n8 and n8 >= 16:
        tile = _round_up(pl.cdiv(n8, 2), 8)
    return tile


def source_input_forward_packed(toks, wbig, consts, meta, *,
                                out_dtype=jnp.float32, max_tile=1024):
    """toks: (N, 8) pre-packed token slab.  Returns (N, 4*d_embed)."""
    N = toks.shape[0]
    D = meta["d_embed"]
    d4 = 4 * D

    tile = _choose_tile(N, max_tile)
    n_pad = _round_up(N, tile)
    if n_pad != N:
        toks = jnp.pad(toks, ((0, n_pad - N), (0, 0)))            # padded rows -> sliced off

    kern = functools.partial(source_input_kernel, d_embed=D, vocab=meta["vocab"],
                             six_f=meta["six_f"], k_pad=meta["k_pad"])

    out = pl.pallas_call(
        kern,
        out_shape=jax.ShapeDtypeStruct((n_pad, d4), out_dtype),
        grid=(n_pad // tile,),
        in_specs=[
            pl.BlockSpec((tile, 8), lambda i: (i, 0)),            # packed per-token scalars
            pl.BlockSpec(consts.shape, lambda i: (0, 0)),         # packed constant slab
            pl.BlockSpec(wbig.shape, lambda i: (0, 0)),           # fused Ws/bias/emb matrix
        ],
        out_specs=pl.BlockSpec((tile, d4), lambda i: (i, 0)),
        compiler_params=pltpu.CompilerParams(dimension_semantics=("parallel",)),
    )(toks, consts, wbig)

    return out[:N]


def source_input_forward(region_id, x, y, arrival_time, departure_time, packed,
                         *, out_dtype=jnp.float32, max_tile=1024):
    """region_id: (B, S) int; x/y/arrival/departure: (B, S) f32.
    `packed` = pack_params(params, d_embed) computed once.
    Returns visit_embedding: (B, S, 4*d_embed).  Pass out_dtype=jnp.bfloat16 on
    writeback-bound chips (v5e) if downstream accepts bf16."""
    wbig, consts, meta = packed
    B, S = region_id.shape
    toks = pack_tokens(region_id, x, y, arrival_time, departure_time)
    out = source_input_forward_packed(toks, wbig, consts, meta,
                                      out_dtype=out_dtype, max_tile=max_tile)
    return out.reshape(B, S, 4 * meta["d_embed"])


# ---------------------------------------------------------------------------------
# Synthetic parameters + pure-JAX reference
# ---------------------------------------------------------------------------------
def init_params(key, num_regions, d_embed, lambda_min, lambda_max):
    """Deterministic synthetic parameters (shapes implied by the module __init__)."""
    vocab = N_SPECIAL_TOKENS + num_regions
    k1, k2, k3, k4, k5, _ = jax.random.split(key, 6)

    # Space2Vec: geometric scales, 3 directions -> projection vectors Px, Py (1, 3F)
    F = NUM_SCALES
    scales = lambda_min * (lambda_max / lambda_min) ** (jnp.arange(F) / max(F - 1, 1))
    thetas = 2.0 * jnp.pi * jnp.arange(NUM_DIRS) / NUM_DIRS
    dir_x = jnp.cos(thetas)
    dir_y = jnp.sin(thetas)
    px = (dir_x[None, :] / scales[:, None]).reshape(1, F * NUM_DIRS).astype(jnp.float32)
    py = (dir_y[None, :] / scales[:, None]).reshape(1, F * NUM_DIRS).astype(jnp.float32)
    ws = (jax.random.normal(k1, (2 * F * NUM_DIRS, d_embed)) * 0.1).astype(jnp.float32)
    bs = (jax.random.normal(k2, (1, d_embed)) * 0.01).astype(jnp.float32)

    # Time2Vec: per-output frequency & phase
    wt = (jax.random.normal(k3, (1, d_embed)) * 0.5).astype(jnp.float32)
    bt = (jax.random.normal(k4, (1, d_embed)) * 0.1).astype(jnp.float32)

    # Region embedding table, padding_idx=PAD row zeroed
    emb = (jax.random.normal(k5, (vocab, d_embed)) * 0.2).astype(jnp.float32)
    emb = emb.at[PAD].set(0.0)

    return (px, py, ws, bs, wt, bt, emb)


def reference_forward(region_id, x, y, arrival_time, departure_time, params, d_embed):
    """Pure-JAX reference mirroring the PyTorch forward semantics."""
    px, py, ws, bs, wt, bt, emb = params
    xf = x[..., None].astype(jnp.float32)
    yf = y[..., None].astype(jnp.float32)
    angles = xf * px[0] + yf * py[0]
    feat = jnp.concatenate([jnp.sin(angles), jnp.cos(angles)], axis=-1)
    space_enc = feat @ ws + bs[0]

    def t2v(t):
        ang = t[..., None] * wt[0] + bt[0]
        k = jnp.arange(d_embed)
        return jnp.where(k == 0, ang, jnp.sin(ang))

    arr_enc = t2v(arrival_time.astype(jnp.float32))
    dep_enc = t2v(departure_time.astype(jnp.float32))
    region_emb = emb[region_id]
    return jnp.concatenate([space_enc, arr_enc, dep_enc, region_emb], axis=-1)


# ---------------------------------------------------------------------------------
if __name__ == "__main__":
    num_regions = 16
    d_embed = 32
    lambda_min, lambda_max = 0.1, 100.0
    B, S = 2, 64                    # N = 128 tokens -> 2 grid steps of 64 rows

    key = jax.random.PRNGKey(0)
    kp, kr, kx, ky, ka, kd = jax.random.split(key, 6)

    params = init_params(kp, num_regions, d_embed, lambda_min, lambda_max)
    packed = pack_params(params, d_embed)            # hoisted: computed once per model
    vocab = N_SPECIAL_TOKENS + num_regions

    region_id = jax.random.randint(kr, (B, S), 0, vocab, dtype=jnp.int32)
    x = jax.random.normal(kx, (B, S), dtype=jnp.float32) * 2.0
    y = jax.random.normal(ky, (B, S), dtype=jnp.float32) * 2.0
    arrival_time = jax.random.uniform(ka, (B, S), dtype=jnp.float32) * 24.0
    departure_time = arrival_time + jax.random.uniform(kd, (B, S), dtype=jnp.float32) * 4.0

    out = source_input_forward(region_id, x, y, arrival_time, departure_time,
                               packed, d_embed and packed[2]["d_embed"] and packed)[0] \
        if False else source_input_forward(region_id, x, y, arrival_time,
                                           departure_time, packed)
    out = jax.block_until_ready(out)

    ref = reference_forward(region_id, x, y, arrival_time, departure_time, params, d_embed)
    assert out.shape == (B, S, 4 * d_embed)
    assert jnp.allclose(out, ref, atol=2e-2, rtol=2e-2), "mismatch vs JAX reference"

    print("KERNEL_OK")
</pallas_src>

<mosaic_0001>
module attributes {stable_mosaic.version = 11 : i64} {
  func.func @source_input_kernel(%arg0: i32, %arg1: memref<64x8xf32, #tpu.memory_space<vmem>>, %arg2: memref<8x128xf32, #tpu.memory_space<vmem>>, %arg3: memref<128x128xbf16, #tpu.memory_space<vmem>>, %arg4: memref<64x128xf32, #tpu.memory_space<vmem>>) attributes {dimension_semantics = [#tpu.dimension_semantics<parallel>], iteration_bounds = array<i64: 2>, scalar_prefetch = 0 : i64, scratch_operands = 0 : i64, tpu.core_type = #tpu.core_type<tc>, window_params = [{transform_indices = @transform_0, window_bounds = array<i64: 64, 8>}, {pipeline_mode = #tpu.pipeline_mode<synchronous>, transform_indices = @transform_1, window_bounds = array<i64: 8, 128>}, {pipeline_mode = #tpu.pipeline_mode<synchronous>, transform_indices = @transform_2, window_bounds = array<i64: 128, 128>}, {transform_indices = @transform_3, window_bounds = array<i64: 64, 128>}]} {
    %c0 = arith.constant 0 : index
    %c0_0 = arith.constant 0 : index
    %0 = vector.load %arg1[%c0, %c0_0] : memref<64x8xf32, #tpu.memory_space<vmem>>, vector<64x8xf32>
    %1 = vector.extract_strided_slice %0 {offsets = [0, 0], sizes = [64, 1], strides = [1, 1]} : vector<64x8xf32> to vector<64x1xf32>
    %2 = vector.extract_strided_slice %0 {offsets = [0, 1], sizes = [64, 1], strides = [1, 1]} : vector<64x8xf32> to vector<64x1xf32>
    %3 = vector.extract_strided_slice %0 {offsets = [0, 2], sizes = [64, 1], strides = [1, 1]} : vector<64x8xf32> to vector<64x1xf32>
    %4 = vector.extract_strided_slice %0 {offsets = [0, 3], sizes = [64, 1], strides = [1, 1]} : vector<64x8xf32> to vector<64x1xf32>
    %5 = vector.extract_strided_slice %0 {offsets = [0, 4], sizes = [64, 1], strides = [1, 1]} : vector<64x8xf32> to vector<64x1xf32>
    %6 = arith.fptosi %5 : vector<64x1xf32> to vector<64x1xi32>
    %c0_1 = arith.constant 0 : index
    %c0_2 = arith.constant 0 : index
    %7 = vector.load %arg2[%c0_1, %c0_2] : memref<8x128xf32, #tpu.memory_space<vmem>>, vector<1x128xf32>
    %c1 = arith.constant 1 : index
    %c0_3 = arith.constant 0 : index
    %8 = vector.load %arg2[%c1, %c0_3] : memref<8x128xf32, #tpu.memory_space<vmem>>, vector<1x128xf32>
    %c2 = arith.constant 2 : index
    %c0_4 = arith.constant 0 : index
    %9 = vector.load %arg2[%c2, %c0_4] : memref<8x128xf32, #tpu.memory_space<vmem>>, vector<1x128xf32>
    %c4 = arith.constant 4 : index
    %c0_5 = arith.constant 0 : index
    %10 = vector.load %arg2[%c4, %c0_5] : memref<8x128xf32, #tpu.memory_space<vmem>>, vector<1x128xf32>
    %c5 = arith.constant 5 : index
    %c0_6 = arith.constant 0 : index
    %11 = vector.load %arg2[%c5, %c0_6] : memref<8x128xf32, #tpu.memory_space<vmem>>, vector<1x128xf32>
    %12 = tpu.iota {dimensions = array<i32: 1>} : vector<64x128xi32>
    %13 = vector.broadcast %1 : vector<64x1xf32> to vector<64x128xf32>
    %14 = vector.broadcast %7 : vector<1x128xf32> to vector<64x128xf32>
    %15 = arith.mulf %13, %14 : vector<64x128xf32>
    %16 = vector.broadcast %2 : vector<64x1xf32> to vector<64x128xf32>
    %17 = vector.broadcast %8 : vector<1x128xf32> to vector<64x128xf32>
    %18 = arith.mulf %16, %17 : vector<64x128xf32>
    %19 = arith.addf %15, %18 : vector<64x128xf32>
    %20 = vector.broadcast %9 : vector<1x128xf32> to vector<64x128xf32>
    %21 = arith.addf %19, %20 : vector<64x128xf32>
    %c48_i32 = arith.constant 48 : i32
    %22 = vector.broadcast %c48_i32 : i32 to vector<64x128xi32>
    %23 = arith.subi %12, %22 : vector<64x128xi32>
    %24 = vector.broadcast %6 : vector<64x1xi32> to vector<64x128xi32>
    %25 = arith.cmpi eq, %23, %24 : vector<64x128xi32>
    %c68_i32 = arith.constant 68 : i32
    %26 = vector.broadcast %c68_i32 : i32 to vector<64x128xi32>
    %27 = arith.cmpi eq, %12, %26 : vector<64x128xi32>
    %28 = arith.ori %25, %27 : vector<64x128xi1>
    %29 = arith.extui %28 : vector<64x128xi1> to vector<64x128xi32>
    %30 = arith.sitofp %29 : vector<64x128xi32> to vector<64x128xf32>
    %c48_i32_7 = arith.constant 48 : i32
    %31 = vector.broadcast %c48_i32_7 : i32 to vector<64x128xi32>
    %32 = arith.cmpi slt, %12, %31 : vector<64x128xi32>
    %33 = math.sin %21 : vector<64x128xf32>
    %34 = arith.select %32, %33, %30 : vector<64x128xi1>, vector<64x128xf32>
    %35 = arith.truncf %34 : vector<64x128xf32> to vector<64x128xbf16>
    %c0_8 = arith.constant 0 : index
    %c0_9 = arith.constant 0 : index
    %36 = vector.load %arg3[%c0_8, %c0_9] : memref<128x128xbf16, #tpu.memory_space<vmem>>, vector<128x128xbf16>
    %cst = arith.constant dense<0.000000e+00> : vector<64x128xf32>
    %37 = tpu.matmul %35, %36, %cst {dimension_numbers = #tpu.dot_dimension_numbers<[1], [0], [0], [1], [0, 0, 1, 1], [], []>} : vector<64x128xbf16>, vector<128x128xbf16>, vector<64x128xf32> -> vector<64x128xf32>
    %38 = tpu.iota {dimensions = array<i32: 1>} : vector<64x128xi32>
    %c32_i32 = arith.constant 32 : i32
    %39 = vector.broadcast %c32_i32 : i32 to vector<64x128xi32>
    %40 = arith.cmpi sge, %38, %39 : vector<64x128xi32>
    %c64_i32 = arith.constant 64 : i32
    %41 = vector.broadcast %c64_i32 : i32 to vector<64x128xi32>
    %42 = arith.cmpi slt, %38, %41 : vector<64x128xi32>
    %43 = arith.andi %40, %42 : vector<64x128xi1>
    %44 = vector.shape_cast %3 : vector<64x1xf32> to vector<64x1xf32>
    %45 = vector.broadcast %44 : vector<64x1xf32> to vector<64x128xf32>
    %46 = vector.shape_cast %4 : vector<64x1xf32> to vector<64x1xf32>
    %47 = vector.broadcast %46 : vector<64x1xf32> to vector<64x128xf32>
    %48 = arith.select %43, %45, %47 : vector<64x128xi1>, vector<64x128xf32>
    %49 = vector.broadcast %10 : vector<1x128xf32> to vector<64x128xf32>
    %50 = arith.mulf %48, %49 : vector<64x128xf32>
    %51 = vector.broadcast %11 : vector<1x128xf32> to vector<64x128xf32>
    %52 = arith.addf %50, %51 : vector<64x128xf32>
    %c32_i32_10 = arith.constant 32 : i32
    %53 = vector.broadcast %c32_i32_10 : i32 to vector<64x128xi32>
    %54 = arith.cmpi eq, %38, %53 : vector<64x128xi32>
    %c64_i32_11 = arith.constant 64 : i32
    %55 = vector.broadcast %c64_i32_11 : i32 to vector<64x128xi32>
    %56 = arith.cmpi eq, %38, %55 : vector<64x128xi32>
    %57 = arith.ori %54, %56 : vector<64x128xi1>
    %58 = math.sin %52 : vector<64x128xf32>
    %59 = arith.select %57, %52, %58 : vector<64x128xi1>, vector<64x128xf32>
    %60 = arith.addf %37, %59 : vector<64x128xf32>
    %c0_12 = arith.constant 0 : index
    %c0_13 = arith.constant 0 : index
    %61 = vector.load %arg4[%c0_12, %c0_13] : memref<64x128xf32, #tpu.memory_space<vmem>>, vector<64x128xf32>
    tpu.vector_store %arg4[%c0_12, %c0_13], %60 {strides = array<i32>} : memref<64x128xf32, #tpu.memory_space<vmem>>, vector<64x128xf32>,
    return
  }
  func.func @transform_0(%arg0: i32) -> (i32, i32) {
    %c0_i32 = arith.constant 0 : i32
    %c0_i32_0 = arith.constant 0 : i32
    return %arg0, %c0_i32 : i32, i32
  }
  func.func @transform_1(%arg0: i32) -> (i32, i32) {
    %c0_i32 = arith.constant 0 : i32
    %c0_i32_0 = arith.constant 0 : i32
    %c0_i32_1 = arith.constant 0 : i32
    return %c0_i32, %c0_i32_0 : i32, i32
  }
  func.func @transform_2(%arg0: i32) -> (i32, i32) {
    %c0_i32 = arith.constant 0 : i32
    %c0_i32_0 = arith.constant 0 : i32
    %c0_i32_1 = arith.constant 0 : i32
    return %c0_i32, %c0_i32_0 : i32, i32
  }
  func.func @transform_3(%arg0: i32) -> (i32, i32) {
    %c0_i32 = arith.constant 0 : i32
    %c0_i32_0 = arith.constant 0 : i32
    return %arg0, %c0_i32 : i32, i32
  }
}

</mosaic_0001>

<llo_original>
// kernel: tpu_custom_call.1
$region0: #{tpu_custom_call.1}
  #allocation0 [shape = 'u32[]', space=smem, size = 0x4, offset = 0x4, fixed_abs, tag = 'smem constant byte address 0x4 - core index']
  #allocation1 [shape = 'u32[144,128]{1,0:T(1,128)}', space=vmem, size = 0x12000, scoped, tag = 'internal scratch']
  %s0 = inlined_call_operand.vmem [shape: f32[128,8], index: 0, kind: input, shape index: {}]
  %s1 = inlined_call_operand.vmem [shape: f32[8,128], index: 1, kind: input, shape index: {}]
  %s2 = inlined_call_operand.vmem [shape: bf16[128,128], index: 2, kind: input, shape index: {}]
  %s3 = inlined_call_operand.hbm [shape: f32[128,128], index: 3, kind: output, shape index: {}]
  %s4 = sld [smem:[#allocation0]]
  $region45: #{tpu_custom_call.1} parent=0
    _
  %s6 = ssub.s32 1, %s4
  %s7 = scalar_select 0, %s6, %s4
  $region1: #{tpu_custom_call.1} parent=0
    #allocation2 [shape = 'u8[65536]{0}', space=vmem, size = 0x10000, scoped, tag = 'output window, operand 0']
    #allocation3 [shape = 's32[2]{0}', space=sflag, size = 0x8, scoped, tag = 'scoped memory for tpu_custom_call.1']
    %8 = vsyncpa [#allocation3], 0
    %s9 = scalar_lea.sflag [#allocation3], 1
    %10 = vsyncpa %s9, 0
    loop: start=0, step=1, limit=4
    $region2: #{tpu_custom_call.1} parent=1 // loop_pre_header
      _
    $region3: #{tpu_custom_call.1} parent=1 // loop_header
      %s12 = sphi 0, %s16
      %p13 = scmp.ge.s32.totalorder %s12, 4
      %s22 = sphi 0, %s24
      %s25 = sphi 0, %s22
      %s26 = sphi 0, %s25
      %s42 = sphi 0, %s26
      %s46 = sphi 0, %s46
      %s48 = sphi 0, %s46
      %s49 = sphi 0, %s48
      %s63 = sphi 0, %s49
      %s67 = sphi 0, %s67
      %s69 = sphi 0, %s67
      %s70 = sphi 0, %s69
      %s84 = sphi 0, %s70
      %s90 = sphi 0, %s92
      %s93 = sphi 0, %s90
      %s94 = sphi 0, %s93
      %s110 = sphi 0, %s94
    $region4: #{tpu_custom_call.1} parent=1 // loop_header_branch
      %15 = sbr.rel (%p13) target = $region8
    $region5: #{tpu_custom_call.1} parent=1 // loop_body
      %s17 = ssub.s32 %s12, 1
      %s18 = ssub.s32 %s12, 2
      %s19 = sadd.s32 %s12, 1
      %s20 = ssub.s32 %s12, %s19
      %p21 = scmp.eq.s32.totalorder %s20, 0
      %s23 = sadd.s32 %s22, 1
      %s24 = scalar_select %p21, %s22, %s23
      %p27 = pneg %p21
      %p28 = scmp.eq.s32.totalorder %s12, 1
      %p29 = por %p27, %p28
      %p30 = scmp.ne.s32.totalorder %s22, %s25
      %p31 = scmp.eq.s32.totalorder %s12, 0
      %p32 = por %p30, %p31
      %p33 = scmp.ne.s32.totalorder %s22, %s25
      %p34 = scmp.eq.s32.totalorder %s17, 1
      %p35 = por %p33, %p34
      %p36 = scmp.ne.s32.totalorder %s25, %s26
      %p37 = scmp.eq.s32.totalorder %s17, 0
      %p38 = por %p36, %p37
      %p39 = scmp.ne.s32.totalorder %s25, %s26
      %p40 = scmp.eq.s32.totalorder %s18, 1
      %p41 = por %p39, %p40
      %p43 = scmp.ne.s32.totalorder %s26, %s42
      %p44 = scmp.eq.s32.totalorder %s18, 0
      %p45 = por %p43, %p44
      %s47 = sadd.s32 %s46, 1
      %p50 = scmp.eq.s32.totalorder %s12, 1
      %p51 = scmp.ne.s32.totalorder %s46, %s48
      %p52 = scmp.eq.s32.totalorder %s12, 0
      %p53 = por %p51, %p52
      %p54 = scmp.ne.s32.totalorder %s46, %s48
      %p55 = scmp.eq.s32.totalorder %s17, 1
      %p56 = por %p54, %p55
      %p57 = scmp.ne.s32.totalorder %s48, %s49
      %p58 = scmp.eq.s32.totalorder %s17, 0
      %p59 = por %p57, %p58
      %p60 = scmp.ne.s32.totalorder %s48, %s49
      %p61 = scmp.eq.s32.totalorder %s18, 1
      %p62 = por %p60, %p61
      %p64 = scmp.ne.s32.totalorder %s49, %s63
      %p65 = scmp.eq.s32.totalorder %s18, 0
      %p66 = por %p64, %p65
      %s68 = sadd.s32 %s67, 1
      %p71 = scmp.eq.s32.totalorder %s12, 1
      %p72 = scmp.ne.s32.totalorder %s67, %s69
      %p73 = scmp.eq.s32.totalorder %s12, 0
      %p74 = por %p72, %p73
      %p75 = scmp.ne.s32.totalorder %s67, %s69
      %p76 = scmp.eq.s32.totalorder %s17, 1
      %p77 = por %p75, %p76
      %p78 = scmp.ne.s32.totalorder %s69, %s70
      %p79 = scmp.eq.s32.totalorder %s17, 0
      %p80 = por %p78, %p79
      %p81 = scmp.ne.s32.totalorder %s69, %s70
      %p82 = scmp.eq.s32.totalorder %s18, 1
      %p83 = por %p81, %p82
      %p85 = scmp.ne.s32.totalorder %s70, %s84
      %p86 = scmp.eq.s32.totalorder %s18, 0
      %p87 = por %p85, %p86
      %s88 = ssub.s32 %s12, %s19
      %p89 = scmp.eq.s32.totalorder %s88, 0
      %s91 = sadd.s32 %s90, 1
      %s92 = scalar_select %p89, %s90, %s91
      %p95 = pneg %p89
      %p96 = scmp.eq.s32.totalorder %s12, 1
      %p97 = por %p95, %p96
      %p98 = scmp.ne.s32.totalorder %s90, %s93
      %p99 = scmp.eq.s32.totalorder %s12, 0
      %p100 = por %p98, %p99
      %p101 = scmp.ne.s32.totalorder %s90, %s93
      %p102 = scmp.eq.s32.totalorder %s17, 1
      %p103 = por %p101, %p102
      %p104 = scmp.ne.s32.totalorder %s93, %s94
      %p105 = scmp.eq.s32.totalorder %s17, 0
      %p106 = por %p104, %p105
      %p107 = scmp.ne.s32.totalorder %s93, %s94
      %p108 = scmp.eq.s32.totalorder %s18, 1
      %p109 = por %p107, %p108
      %p111 = scmp.ne.s32.totalorder %s94, %s110
      %p112 = scmp.eq.s32.totalorder %s18, 0
      %p113 = por %p111, %p112
      %p114 = scmp.le.s32.totalorder 1, %s12
      %p115 = scmp.lt.s32.totalorder %s12, 3
      %p116 = pnand %p114, %p115
      %p117 = pneg %p116
      // Predicated region
      $region9: #{tpu_custom_call.1} parent=5 // pred_check
        _
      $region10: #{tpu_custom_call.1} parent=5 // pred_check_branch
        %119 = sbr.rel (%p116) target = $region12
      $region11: #{tpu_custom_call.1} parent=5 // pred_region
        %s120 = ssub.s32 %s12, 1
        // Predicated region
        $region13: #{tpu_custom_call.1} parent=11 // pred_check
          %p121 = pneg %p59
        $region14: #{tpu_custom_call.1} parent=11 // pred_check_branch
          %123 = sbr.rel (%p121) target = $region16
        $region15: #{tpu_custom_call.1} parent=11 // pred_region
          _
        $region16: #{tpu_custom_call.1} parent=11 // pred_fallthru
          _
        // Predicated region
        $region17: #{tpu_custom_call.1} parent=11 // pred_check
          %p124 = pneg %p80
        $region18: #{tpu_custom_call.1} parent=11 // pred_check_branch
          %126 = sbr.rel (%p124) target = $region20
        $region19: #{tpu_custom_call.1} parent=11 // pred_region
          _
        $region20: #{tpu_custom_call.1} parent=11 // pred_fallthru
          _
      $region12: #{tpu_custom_call.1} parent=5 // pred_fallthru
        _
      %p127 = scmp.lt.s32.totalorder %s12, 2
      // Predicated region
      $region21: #{tpu_custom_call.1} parent=5 // pred_check
        %p128 = pneg %p127
      $region22: #{tpu_custom_call.1} parent=5 // pred_check_branch
        %130 = sbr.rel (%p128) target = $region24
      $region23: #{tpu_custom_call.1} parent=5 // pred_region
        // Predicated region
        $region25: #{tpu_custom_call.1} parent=23 // pred_check
          %p131 = pneg %p32
        $region26: #{tpu_custom_call.1} parent=23 // pred_check_branch
          %133 = sbr.rel (%p131) target = $region28
        $region27: #{tpu_custom_call.1} parent=23 // pred_region
          %s134 = smul.u32 8, %s12
          %p135 = scmp.lt.s32.totalorder %s134, 15
          %s136 = scalar_select %p135, %s134, 15
          %s137 = smul.addr %s136, 8
          %s138 = scalar_lea.vmem %s0, %s137
          %s139 = smul.u32 8, %s12
        $region28: #{tpu_custom_call.1} parent=23 // pred_fallthru
          _
      $region24: #{tpu_custom_call.1} parent=5 // pred_fallthru
        _
      %p140 = scmp.le.s32.totalorder 1, %s12
      %p141 = scmp.lt.s32.totalorder %s12, 3
      %p142 = pnand %p140, %p141
      %p143 = pneg %p142
      // Predicated region
      $region29: #{tpu_custom_call.1} parent=5 // pred_check
        _
      $region30: #{tpu_custom_call.1} parent=5 // pred_check_branch
        %145 = sbr.rel (%p142) target = $region32
      $region31: #{tpu_custom_call.1} parent=5 // pred_region
        %s146 = ssub.s32 %s12, 1
        %s147 = smul.u32 8, %s17
        %p148 = scmp.lt.s32.totalorder %s147, 15
        %s149 = scalar_select %p148, %s147, 15
        %s150 = smul.addr %s149, 8
        %s151 = scalar_lea.vmem %s0, %s150
        %p152 = pneg %p38
        %p153 = pneg %p35
        %p154 = pneg %p59
        %p155 = pneg %p56
        %p156 = pneg %p80
        %p157 = pneg %p77
        %p158 = pneg %p106
        %p159 = pneg %p103
        %s160 = sand.u32 %s93, 1
        %s161 = scalar_lea.sflag [#allocation3], %s160
        %s162 = sand.u32 %s93, 1
        %s163 = smul.addr %s162, 64
        %s164 = scalar_lea.vmem [#allocation2], %s163
        %s165 = smul.u32 8, %s17
        %p166 = scmp.lt.s32.totalorder %s165, 15
        %s167 = scalar_select %p166, %s165, 15
        %s168 = smul.addr %s167, 8
        %s169 = scalar_lea.vmem %s0, %s168
        %s170 = smul.u32 8, %s17
        %s171 = smul.u32 8, %s17
        %v173 = vld [vmem:[%s169] sm:$0xff]
        %v174 = vld [vmem:[%s169 + $0x8] sm:$0xff]
        %v175 = vld [vmem:[%s169 + $0x10] sm:$0xff]
        %v176 = vld [vmem:[%s169 + $0x18] sm:$0xff]
        %v177 = vld [vmem:[%s169 + $0x20] sm:$0xff]
        %v178 = vld [vmem:[%s169 + $0x28] sm:$0xff]
        %v179 = vld [vmem:[%s169 + $0x30] sm:$0xff]
        %v180 = vld [vmem:[%s169 + $0x38] sm:$0xff]
        %v181 = vcvt.f32.s32.to.zero.pseudo %v173
        %v182 = vcvt.f32.s32.to.zero.pseudo %v174
        %v183 = vcvt.f32.s32.to.zero.pseudo %v175
        %v184 = vcvt.f32.s32.to.zero.pseudo %v176
        %v185 = vcvt.f32.s32.to.zero.pseudo %v177
        %v186 = vcvt.f32.s32.to.zero.pseudo %v178
        %v187 = vcvt.f32.s32.to.zero.pseudo %v179
        %v188 = vcvt.f32.s32.to.zero.pseudo %v180
        %v189 = vld [vmem:[%s1] sm:$0x1]
        %v190 = vld [vmem:[%s1 + $0x1] sm:$0x1]
        %v191 = vld [vmem:[%s1 + $0x2] sm:$0x1]
        %v192 = vld [vmem:[%s1 + $0x4] sm:$0x1]
        %v193 = vld [vmem:[%s1 + $0x5] sm:$0x1]
        %v194 = vlaneseq
        %v195 = vand.u32 %v194, 127
        %197 = vset.pattern.permute.xlu0 0
        %198 = vperm.xlu0 %197, %v173
        %v199 = vpop.permute.xlu0 %198
        %202 = vset.pattern.permute.xlu0 0
        %203 = vperm.xlu0 %202, %v174
        %v204 = vpop.permute.xlu0 %203
        %207 = vset.pattern.permute.xlu0 0
        %208 = vperm.xlu0 %207, %v175
        %v209 = vpop.permute.xlu0 %208
        %212 = vset.pattern.permute.xlu0 0
        %213 = vperm.xlu0 %212, %v176
        %v214 = vpop.permute.xlu0 %213
        %217 = vset.pattern.permute.xlu0 0
        %218 = vperm.xlu0 %217, %v177
        %v219 = vpop.permute.xlu0 %218
        %222 = vset.pattern.permute.xlu0 0
        %223 = vperm.xlu0 %222, %v178
        %v224 = vpop.permute.xlu0 %223
        %227 = vset.pattern.permute.xlu0 0
        %228 = vperm.xlu0 %227, %v179
        %v229 = vpop.permute.xlu0 %228
        %232 = vset.pattern.permute.xlu0 0
        %233 = vperm.xlu0 %232, %v180
        %v234 = vpop.permute.xlu0 %233
        %v236 = vlaneseq
        %v237 = vshrl.u32 %v236, 7
        %v238 = vsub.s32 0, %v237
        %v239 = vrot.slane %v189, %v238
        %v240 = vmul.f32 %v199, %v239
        %v241 = vmul.f32 %v204, %v239
        %v242 = vmul.f32 %v209, %v239
        %v243 = vmul.f32 %v214, %v239
        %v244 = vmul.f32 %v219, %v239
        %v245 = vmul.f32 %v224, %v239
        %v246 = vmul.f32 %v229, %v239
        %v247 = vmul.f32 %v234, %v239
        %248 = vset.pattern.permute.xlu0 1
        %249 = vperm.xlu0 %248, %v173
        %v250 = vpop.permute.xlu0 %249
        %252 = vset.pattern.permute.xlu0 1
        %253 = vperm.xlu0 %252, %v174
        %v254 = vpop.permute.xlu0 %253
        %256 = vset.pattern.permute.xlu0 1
        %257 = vperm.xlu0 %256, %v175
        %v258 = vpop.permute.xlu0 %257
        %260 = vset.pattern.permute.xlu0 1
        %261 = vperm.xlu0 %260, %v176
        %v262 = vpop.permute.xlu0 %261
        %264 = vset.pattern.permute.xlu0 1
        %265 = vperm.xlu0 %264, %v177
        %v266 = vpop.permute.xlu0 %265
        %268 = vset.pattern.permute.xlu0 1
        %269 = vperm.xlu0 %268, %v178
        %v270 = vpop.permute.xlu0 %269
        %272 = vset.pattern.permute.xlu0 1
        %273 = vperm.xlu0 %272, %v179
        %v274 = vpop.permute.xlu0 %273
        %276 = vset.pattern.permute.xlu0 1
        %277 = vperm.xlu0 %276, %v180
        %v278 = vpop.permute.xlu0 %277
        %v280 = vlaneseq
        %v281 = vshrl.u32 %v280, 7
        %v282 = vsub.s32 0, %v281
        %v283 = vrot.slane %v190, %v282
        %v284 = vmul.f32 %v250, %v283
        %v285 = vmul.f32 %v254, %v283
        %v286 = vmul.f32 %v258, %v283
        %v287 = vmul.f32 %v262, %v283
        %v288 = vmul.f32 %v266, %v283
        %v289 = vmul.f32 %v270, %v283
        %v290 = vmul.f32 %v274, %v283
        %v291 = vmul.f32 %v278, %v283
        %v292 = vadd.f32 %v240, %v284
        %v293 = vadd.f32 %v241, %v285
        %v294 = vadd.f32 %v242, %v286
        %v295 = vadd.f32 %v243, %v287
        %v296 = vadd.f32 %v244, %v288
        %v297 = vadd.f32 %v245, %v289
        %v298 = vadd.f32 %v246, %v290
        %v299 = vadd.f32 %v247, %v291
        %v300 = vlaneseq
        %v301 = vshrl.u32 %v300, 7
        %v302 = vsub.s32 0, %v301
        %v303 = vrot.slane %v191, %v302
        %v304 = vadd.f32 %v292, %v303
        %v305 = vadd.f32 %v293, %v303
        %v306 = vadd.f32 %v294, %v303
        %v307 = vadd.f32 %v295, %v303
        %v308 = vadd.f32 %v296, %v303
        %v309 = vadd.f32 %v297, %v303
        %v310 = vadd.f32 %v298, %v303
        %v311 = vadd.f32 %v299, %v303
        %v312 = vsub.s32 %v195, 48
        %313 = vset.pattern.permute.xlu0 4
        %314 = vperm.xlu0 %313, %v181
        %v315 = vpop.permute.xlu0 %314
        %316 = vset.pattern.permute.xlu0 4
        %317 = vperm.xlu0 %316, %v182
        %v318 = vpop.permute.xlu0 %317
        %319 = vset.pattern.permute.xlu0 4
        %320 = vperm.xlu0 %319, %v183
        %v321 = vpop.permute.xlu0 %320
        %322 = vset.pattern.permute.xlu0 4
        %323 = vperm.xlu0 %322, %v184
        %v324 = vpop.permute.xlu0 %323
        %325 = vset.pattern.permute.xlu0 4
        %326 = vperm.xlu0 %325, %v185
        %v327 = vpop.permute.xlu0 %326
        %328 = vset.pattern.permute.xlu0 4
        %329 = vperm.xlu0 %328, %v186
        %v330 = vpop.permute.xlu0 %329
        %331 = vset.pattern.permute.xlu0 4
        %332 = vperm.xlu0 %331, %v187
        %v333 = vpop.permute.xlu0 %332
        %334 = vset.pattern.permute.xlu0 4
        %335 = vperm.xlu0 %334, %v188
        %v336 = vpop.permute.xlu0 %335
        %vm337 = vcmp.eq.s32.totalorder %v312, %v315
        %vm338 = vcmp.eq.s32.totalorder %v312, %v318
        %vm339 = vcmp.eq.s32.totalorder %v312, %v321
        %vm340 = vcmp.eq.s32.totalorder %v312, %v324
        %vm341 = vcmp.eq.s32.totalorder %v312, %v327
        %vm342 = vcmp.eq.s32.totalorder %v312, %v330
        %vm343 = vcmp.eq.s32.totalorder %v312, %v333
        %vm344 = vcmp.eq.s32.totalorder %v312, %v336
        %vm345 = vcmp.eq.s32.totalorder %v195, 68
        %vm346 = vmor %vm337, %vm345
        %vm347 = vmor %vm338, %vm345
        %vm348 = vmor %vm339, %vm345
        %vm349 = vmor %vm340, %vm345
        %vm350 = vmor %vm341, %vm345
        %vm351 = vmor %vm342, %vm345
        %vm352 = vmor %vm343, %vm345
        %vm353 = vmor %vm344, %vm345
        %v354 = vsel %vm346, 1, 0
        %v355 = vsel %vm347, 1, 0
        %v356 = vsel %vm348, 1, 0
        %v357 = vsel %vm349, 1, 0
        %v358 = vsel %vm350, 1, 0
        %v359 = vsel %vm351, 1, 0
        %v360 = vsel %vm352, 1, 0
        %v361 = vsel %vm353, 1, 0
        %v362 = vcvt.s32.f32 %v354
        %v363 = vcvt.s32.f32 %v355
        %v364 = vcvt.s32.f32 %v356
        %v365 = vcvt.s32.f32 %v357
        %v366 = vcvt.s32.f32 %v358
        %v367 = vcvt.s32.f32 %v359
        %v368 = vcvt.s32.f32 %v360
        %v369 = vcvt.s32.f32 %v361
        %vm370 = vcmp.lt.s32.totalorder %v195, 48
        %v371 = vand.u32 2147483647, %v304
        %vm372 = vcmp.le.f32.partialorder %v371, 0.7853982
        %vm373 = vcmp.lt.s32.totalorder %v304, 0
        %v374 = vand.u32 %v304, 2139095040
        %v375 = vshrl.u32 %v374, 23
        %v376 = vsub.s32 %v375, 127
        %v377 = vand.u32 2147483647, %v304
        %v378 = vand.u32 %v377, 8388607
        %v379 = vor.u32 %v378, 8388608
        %v380 = vsub.s32 0, %v379
        %v381 = vadd.s32 %v376, 1
        %vm382 = vcmp.gt.s32.totalorder %v381, 0
        %v383 = vsel %vm382, %v381, 0
        %v384 = vshrl.u32 %v383, 5
        %v385 = vand.u32 %v383, 31
        %v386 = vsub.s32 32, %v385
        %v387 = vshrl.u32 683565275, %v386
        %v388 = vshll.u32 683565275, %v385
        %v389 = vshrl.u32 2475754826, %v386
        %v390 = vor.u32 %v388, %v389
        %v391 = vshll.u32 2475754826, %v385
        %v392 = vshrl.u32 2131351028, %v386
        %v393 = vor.u32 %v391, %v392
        %v394 = vshll.u32 2131351028, %v385
        %v395 = vshrl.u32 2102212464, %v386
        %v396 = vor.u32 %v394, %v395
        %v397 = vshll.u32 2102212464, %v385
        %v398 = vshrl.u32 920167782, %v386
        %v399 = vor.u32 %v397, %v398
        %v400 = vshll.u32 920167782, %v385
        %v401 = vshrl.u32 1326507024, %v386
        %v402 = vor.u32 %v400, %v401
        %vm403 = vcmp.lt.s32.totalorder %v384, 1
        %vm404 = vcmp.lt.s32.totalorder %v384, 2
        %vm405 = vcmp.lt.s32.totalorder %v384, 3
        %vm406 = vcmp.lt.s32.totalorder %v384, 4
        %v407 = vsel %vm403, %v387, %v390
        %v408 = vsel %vm406, %v396, 2102212464
        %v409 = vsel %vm405, %v393, %v408
        %v410 = vsel %vm404, %v407, %v409
        %v411 = vsel %vm403, %v390, %v393
        %v412 = vsel %vm406, %v399, 920167782
        %v413 = vsel %vm405, %v396, %v412
        %v414 = vsel %vm404, %v411, %v413
        %v415 = vsel %vm403, %v393, %v396
        %v416 = vsel %vm406, %v402, 1326507024
        %v417 = vsel %vm405, %v399, %v416
        %v418 = vsel %vm404, %v415, %v417
        %v419 = vshll.u32 %v379, 8
        %v420 = vmul.u32.u64.compose %v419, %v418
        %v421 = vextract.low.u32 %v420
        %v422 = vextract.high.u32 %v420
        %v423 = vmul.u32.u64.compose %v419, %v414
        %v424 = vextract.low.u32 %v423
        %v425 = vextract.high.u32 %v423
        %v426 = vmul.u32 %v419, %v410
        %v427 = vadd.s32 %v422, %v424
        %vm428 = vc.u32 %v422, %v424
        %v429 = vadd.s32 %v425, 1
        %v430 = vsel %vm428, %v429, %v425
        %v431 = vadd.s32 %v426, %v430
        %v432 = vadd.s32 %v431, 536870912
        %v433 = vshrl.u32 %v432, 30
        %v434 = vshll.u32 %v433, 30
        %v435 = vsub.s32 %v431, %v434
        %vm436 = vcmp.lt.s32.totalorder %v435, 0
        %v437 = vsub.s32 0, %v435
        %v438 = vsel %vm436, %v437, %v435
        %v439 = vclz %v438
        %v440 = vsub.s32 %v439, 2
        %vm441 = vcmp.gt.s32.totalorder 0, %v440
        %v442 = vsel %vm441, 0, %v440
        %v443 = vsub.s32 32, %v442
        %v444 = vshll.u32 %v435, %v442
        %v445 = vshrl.u32 %v427, %v443
        %v446 = vor.u32 %v444, %v445
        %v447 = vsub.s32 4294967266, %v442
        %v448 = vadd.s32 %v447, 127
        %v449 = vshll.u32 %v448, 23
        %v450 = vor.u32 4788187, %v449
        %v451 = vand.u32 2147483647, %v450
        %v453 = vcvt.s32.f32 %v446
        %v454 = vmul.f32 %v453, %v451
        %v455 = vxor.u32 %v454, 2147483648
        %v456 = vsel %vm373, %v455, %v454
        %v457 = vsub.s32 4, %v433
        %v458 = vsel %vm373, %v457, %v433
        %v459 = vsel %vm372, %v304, %v456
        %v460 = vsel %vm372, 0, %v458
        %v461 = vcosq.f32.pop %v459
        %v462 = vsinq.f32.pop %v459
        %vm463 = vweird.f32 %v304
        %v464 = vadd.s32 %v460, 3
        %v465 = vand.u32 %v464, 3
        %vm466 = vcmp.lt.s32.totalorder %v465, 2
        %vm467 = vcmp.eq.s32.totalorder %v465, 0
        %v468 = vxor.u32 %v462, 2147483648
        %v469 = vsel %vm467, %v461, %v468
        %vm470 = vcmp.eq.s32.totalorder %v465, 2
        %v471 = vxor.u32 %v461, 2147483648
        %v472 = vsel %vm470, %v471, %v462
        %v473 = vsel %vm466, %v469, %v472
        %v474 = vsel %vm463, nan, %v473
        %v475 = vand.u32 2147483647, %v305
        %vm476 = vcmp.le.f32.partialorder %v475, 0.7853982
        %vm477 = vcmp.lt.s32.totalorder %v305, 0
        %v478 = vand.u32 %v305, 2139095040
        %v479 = vshrl.u32 %v478, 23
        %v480 = vsub.s32 %v479, 127
        %v481 = vand.u32 2147483647, %v305
        %v482 = vand.u32 %v481, 8388607
        %v483 = vor.u32 %v482, 8388608
        %v484 = vsub.s32 0, %v483
        %v485 = vadd.s32 %v480, 1
        %vm486 = vcmp.gt.s32.totalorder %v485, 0
        %v487 = vsel %vm486, %v485, 0
        %v488 = vshrl.u32 %v487, 5
        %v489 = vand.u32 %v487, 31
        %v490 = vsub.s32 32, %v489
        %v491 = vshrl.u32 683565275, %v490
        %v492 = vshll.u32 683565275, %v489
        %v493 = vshrl.u32 2475754826, %v490
        %v494 = vor.u32 %v492, %v493
        %v495 = vshll.u32 2475754826, %v489
        %v496 = vshrl.u32 2131351028, %v490
        %v497 = vor.u32 %v495, %v496
        %v498 = vshll.u32 2131351028, %v489
        %v499 = vshrl.u32 2102212464, %v490
        %v500 = vor.u32 %v498, %v499
        %v501 = vshll.u32 2102212464, %v489
        %v502 = vshrl.u32 920167782, %v490
        %v503 = vor.u32 %v501, %v502
        %v504 = vshll.u32 920167782, %v489
        %v505 = vshrl.u32 1326507024, %v490
        %v506 = vor.u32 %v504, %v505
        %vm507 = vcmp.lt.s32.totalorder %v488, 1
        %vm508 = vcmp.lt.s32.totalorder %v488, 2
        %vm509 = vcmp.lt.s32.totalorder %v488, 3
        %vm510 = vcmp.lt.s32.totalorder %v488, 4
        %v511 = vsel %vm507, %v491, %v494
        %v512 = vsel %vm510, %v500, 2102212464
        %v513 = vsel %vm509, %v497, %v512
        %v514 = vsel %vm508, %v511, %v513
        %v515 = vsel %vm507, %v494, %v497
        %v516 = vsel %vm510, %v503, 920167782
        %v517 = vsel %vm509, %v500, %v516
        %v518 = vsel %vm508, %v515, %v517
        %v519 = vsel %vm507, %v497, %v500
        %v520 = vsel %vm510, %v506, 1326507024
        %v521 = vsel %vm509, %v503, %v520
        %v522 = vsel %vm508, %v519, %v521
        %v523 = vshll.u32 %v483, 8
        %v524 = vmul.u32.u64.compose %v523, %v522
        %v525 = vextract.low.u32 %v524
        %v526 = vextract.high.u32 %v524
        %v527 = vmul.u32.u64.compose %v523, %v518
        %v528 = vextract.low.u32 %v527
        %v529 = vextract.high.u32 %v527
        %v530 = vmul.u32 %v523, %v514
        %v531 = vadd.s32 %v526, %v528
        %vm532 = vc.u32 %v526, %v528
        %v533 = vadd.s32 %v529, 1
        %v534 = vsel %vm532, %v533, %v529
        %v535 = vadd.s32 %v530, %v534
        %v536 = vadd.s32 %v535, 536870912
        %v537 = vshrl.u32 %v536, 30
        %v538 = vshll.u32 %v537, 30
        %v539 = vsub.s32 %v535, %v538
        %vm540 = vcmp.lt.s32.totalorder %v539, 0
        %v541 = vsub.s32 0, %v539
        %v542 = vsel %vm540, %v541, %v539
        %v543 = vclz %v542
        %v544 = vsub.s32 %v543, 2
        %vm545 = vcmp.gt.s32.totalorder 0, %v544
        %v546 = vsel %vm545, 0, %v544
        %v547 = vsub.s32 32, %v546
        %v548 = vshll.u32 %v539, %v546
        %v549 = vshrl.u32 %v531, %v547
        %v550 = vor.u32 %v548, %v549
        %v551 = vsub.s32 4294967266, %v546
        %v552 = vadd.s32 %v551, 127
        %v553 = vshll.u32 %v552, 23
        %v554 = vor.u32 4788187, %v553
        %v555 = vand.u32 2147483647, %v554
        %v557 = vcvt.s32.f32 %v550
        %v558 = vmul.f32 %v557, %v555
        %v559 = vxor.u32 %v558, 2147483648
        %v560 = vsel %vm477, %v559, %v558
        %v561 = vsub.s32 4, %v537
        %v562 = vsel %vm477, %v561, %v537
        %v563 = vsel %vm476, %v305, %v560
        %v564 = vsel %vm476, 0, %v562
        %v565 = vcosq.f32.pop %v563
        %v566 = vsinq.f32.pop %v563
        %vm567 = vweird.f32 %v305
        %v568 = vadd.s32 %v564, 3
        %v569 = vand.u32 %v568, 3
        %vm570 = vcmp.lt.s32.totalorder %v569, 2
        %vm571 = vcmp.eq.s32.totalorder %v569, 0
        %v572 = vxor.u32 %v566, 2147483648
        %v573 = vsel %vm571, %v565, %v572
        %vm574 = vcmp.eq.s32.totalorder %v569, 2
        %v575 = vxor.u32 %v565, 2147483648
        %v576 = vsel %vm574, %v575, %v566
        %v577 = vsel %vm570, %v573, %v576
        %v578 = vsel %vm567, nan, %v577
        %v579 = vand.u32 2147483647, %v306
        %vm580 = vcmp.le.f32.partialorder %v579, 0.7853982
        %vm581 = vcmp.lt.s32.totalorder %v306, 0
        %v582 = vand.u32 %v306, 2139095040
        %v583 = vshrl.u32 %v582, 23
        %v584 = vsub.s32 %v583, 127
        %v585 = vand.u32 2147483647, %v306
        %v586 = vand.u32 %v585, 8388607
        %v587 = vor.u32 %v586, 8388608
        %v588 = vsub.s32 0, %v587
        %v589 = vadd.s32 %v584, 1
        %vm590 = vcmp.gt.s32.totalorder %v589, 0
        %v591 = vsel %vm590, %v589, 0
        %v592 = vshrl.u32 %v591, 5
        %v593 = vand.u32 %v591, 31
        %v594 = vsub.s32 32, %v593
        %v595 = vshrl.u32 683565275, %v594
        %v596 = vshll.u32 683565275, %v593
        %v597 = vshrl.u32 2475754826, %v594
        %v598 = vor.u32 %v596, %v597
        %v599 = vshll.u32 2475754826, %v593
        %v600 = vshrl.u32 2131351028, %v594
        %v601 = vor.u32 %v599, %v600
        %v602 = vshll.u32 2131351028, %v593
        %v603 = vshrl.u32 2102212464, %v594
        %v604 = vor.u32 %v602, %v603
        %v605 = vshll.u32 2102212464, %v593
        %v606 = vshrl.u32 920167782, %v594
        %v607 = vor.u32 %v605, %v606
        %v608 = vshll.u32 920167782, %v593
        %v609 = vshrl.u32 1326507024, %v594
        %v610 = vor.u32 %v608, %v609
        %vm611 = vcmp.lt.s32.totalorder %v592, 1
        %vm612 = vcmp.lt.s32.totalorder %v592, 2
        %vm613 = vcmp.lt.s32.totalorder %v592, 3
        %vm614 = vcmp.lt.s32.totalorder %v592, 4
        %v615 = vsel %vm611, %v595, %v598
        %v616 = vsel %vm614, %v604, 2102212464
        %v617 = vsel %vm613, %v601, %v616
        %v618 = vsel %vm612, %v615, %v617
        %v619 = vsel %vm611, %v598, %v601
        %v620 = vsel %vm614, %v607, 920167782
        %v621 = vsel %vm613, %v604, %v620
        %v622 = vsel %vm612, %v619, %v621
        %v623 = vsel %vm611, %v601, %v604
        %v624 = vsel %vm614, %v610, 1326507024
        %v625 = vsel %vm613, %v607, %v624
        %v626 = vsel %vm612, %v623, %v625
        %v627 = vshll.u32 %v587, 8
        %v628 = vmul.u32.u64.compose %v627, %v626
        %v629 = vextract.low.u32 %v628
        %v630 = vextract.high.u32 %v628
        %v631 = vmul.u32.u64.compose %v627, %v622
        %v632 = vextract.low.u32 %v631
        %v633 = vextract.high.u32 %v631
        %v634 = vmul.u32 %v627, %v618
        %v635 = vadd.s32 %v630, %v632
        %vm636 = vc.u32 %v630, %v632
        %v637 = vadd.s32 %v633, 1
        %v638 = vsel %vm636, %v637, %v633
        %v639 = vadd.s32 %v634, %v638
        %v640 = vadd.s32 %v639, 536870912
        %v641 = vshrl.u32 %v640, 30
        %v642 = vshll.u32 %v641, 30
        %v643 = vsub.s32 %v639, %v642
        %vm644 = vcmp.lt.s32.totalorder %v643, 0
        %v645 = vsub.s32 0, %v643
        %v646 = vsel %vm644, %v645, %v643
        %v647 = vclz %v646
        %v648 = vsub.s32 %v647, 2
        %vm649 = vcmp.gt.s32.totalorder 0, %v648
        %v650 = vsel %vm649, 0, %v648
        %v651 = vsub.s32 32, %v650
        %v652 = vshll.u32 %v643, %v650
        %v653 = vshrl.u32 %v635, %v651
        %v654 = vor.u32 %v652, %v653
        %v655 = vsub.s32 4294967266, %v650
        %v656 = vadd.s32 %v655, 127
        %v657 = vshll.u32 %v656, 23
        %v658 = vor.u32 4788187, %v657
        %v659 = vand.u32 2147483647, %v658
        %v661 = vcvt.s32.f32 %v654
        %v662 = vmul.f32 %v661, %v659
        %v663 = vxor.u32 %v662, 2147483648
        %v664 = vsel %vm581, %v663, %v662
        %v665 = vsub.s32 4, %v641
        %v666 = vsel %vm581, %v665, %v641
        %v667 = vsel %vm580, %v306, %v664
        %v668 = vsel %vm580, 0, %v666
        %v669 = vcosq.f32.pop %v667
        %v670 = vsinq.f32.pop %v667
        %vm671 = vweird.f32 %v306
        %v672 = vadd.s32 %v668, 3
        %v673 = vand.u32 %v672, 3
        %vm674 = vcmp.lt.s32.totalorder %v673, 2
        %vm675 = vcmp.eq.s32.totalorder %v673, 0
        %v676 = vxor.u32 %v670, 2147483648
        %v677 = vsel %vm675, %v669, %v676
        %vm678 = vcmp.eq.s32.totalorder %v673, 2
        %v679 = vxor.u32 %v669, 2147483648
        %v680 = vsel %vm678, %v679, %v670
        %v681 = vsel %vm674, %v677, %v680
        %v682 = vsel %vm671, nan, %v681
        %v683 = vand.u32 2147483647, %v307
        %vm684 = vcmp.le.f32.partialorder %v683, 0.7853982
        %vm685 = vcmp.lt.s32.totalorder %v307, 0
        %v686 = vand.u32 %v307, 2139095040
        %v687 = vshrl.u32 %v686, 23
        %v688 = vsub.s32 %v687, 127
        %v689 = vand.u32 2147483647, %v307
        %v690 = vand.u32 %v689, 8388607
        %v691 = vor.u32 %v690, 8388608
        %v692 = vsub.s32 0, %v691
        %v693 = vadd.s32 %v688, 1
        %vm694 = vcmp.gt.s32.totalorder %v693, 0
        %v695 = vsel %vm694, %v693, 0
        %v696 = vshrl.u32 %v695, 5
        %v697 = vand.u32 %v695, 31
        %v698 = vsub.s32 32, %v697
        %v699 = vshrl.u32 683565275, %v698
        %v700 = vshll.u32 683565275, %v697
        %v701 = vshrl.u32 2475754826, %v698
        %v702 = vor.u32 %v700, %v701
        %v703 = vshll.u32 2475754826, %v697
        %v704 = vshrl.u32 2131351028, %v698
        %v705 = vor.u32 %v703, %v704
        %v706 = vshll.u32 2131351028, %v697
        %v707 = vshrl.u32 2102212464, %v698
        %v708 = vor.u32 %v706, %v707
        %v709 = vshll.u32 2102212464, %v697
        %v710 = vshrl.u32 920167782, %v698
        %v711 = vor.u32 %v709, %v710
        %v712 = vshll.u32 920167782, %v697
        %v713 = vshrl.u32 1326507024, %v698
        %v714 = vor.u32 %v712, %v713
        %vm715 = vcmp.lt.s32.totalorder %v696, 1
        %vm716 = vcmp.lt.s32.totalorder %v696, 2
        %vm717 = vcmp.lt.s32.totalorder %v696, 3
        %vm718 = vcmp.lt.s32.totalorder %v696, 4
        %v719 = vsel %vm715, %v699, %v702
        %v720 = vsel %vm718, %v708, 2102212464
        %v721 = vsel %vm717, %v705, %v720
        %v722 = vsel %vm716, %v719, %v721
        %v723 = vsel %vm715, %v702, %v705
        %v724 = vsel %vm718, %v711, 920167782
        %v725 = vsel %vm717, %v708, %v724
        %v726 = vsel %vm716, %v723, %v725
        %v727 = vsel %vm715, %v705, %v708
        %v728 = vsel %vm718, %v714, 1326507024
        %v729 = vsel %vm717, %v711, %v728
        %v730 = vsel %vm716, %v727, %v729
        %v731 = vshll.u32 %v691, 8
        %v732 = vmul.u32.u64.compose %v731, %v730
        %v733 = vextract.low.u32 %v732
        %v734 = vextract.high.u32 %v732
        %v735 = vmul.u32.u64.compose %v731, %v726
        %v736 = vextract.low.u32 %v735
        %v737 = vextract.high.u32 %v735
        %v738 = vmul.u32 %v731, %v722
        %v739 = vadd.s32 %v734, %v736
        %vm740 = vc.u32 %v734, %v736
        %v741 = vadd.s32 %v737, 1
        %v742 = vsel %vm740, %v741, %v737
        %v743 = vadd.s32 %v738, %v742
        %v744 = vadd.s32 %v743, 536870912
        %v745 = vshrl.u32 %v744, 30
        %v746 = vshll.u32 %v745, 30
        %v747 = vsub.s32 %v743, %v746
        %vm748 = vcmp.lt.s32.totalorder %v747, 0
        %v749 = vsub.s32 0, %v747
        %v750 = vsel %vm748, %v749, %v747
        %v751 = vclz %v750
        %v752 = vsub.s32 %v751, 2
        %vm753 = vcmp.gt.s32.totalorder 0, %v752
        %v754 = vsel %vm753, 0, %v752
        %v755 = vsub.s32 32, %v754
        %v756 = vshll.u32 %v747, %v754
        %v757 = vshrl.u32 %v739, %v755
        %v758 = vor.u32 %v756, %v757
        %v759 = vsub.s32 4294967266, %v754
        %v760 = vadd.s32 %v759, 127
        %v761 = vshll.u32 %v760, 23
        %v762 = vor.u32 4788187, %v761
        %v763 = vand.u32 2147483647, %v762
        %v765 = vcvt.s32.f32 %v758
        %v766 = vmul.f32 %v765, %v763
        %v767 = vxor.u32 %v766, 2147483648
        %v768 = vsel %vm685, %v767, %v766
        %v769 = vsub.s32 4, %v745
        %v770 = vsel %vm685, %v769, %v745
        %v771 = vsel %vm684, %v307, %v768
        %v772 = vsel %vm684, 0, %v770
        %v773 = vcosq.f32.pop %v771
        %v774 = vsinq.f32.pop %v771
        %vm775 = vweird.f32 %v307
        %v776 = vadd.s32 %v772, 3
        %v777 = vand.u32 %v776, 3
        %vm778 = vcmp.lt.s32.totalorder %v777, 2
        %vm779 = vcmp.eq.s32.totalorder %v777, 0
        %v780 = vxor.u32 %v774, 2147483648
        %v781 = vsel %vm779, %v773, %v780
        %vm782 = vcmp.eq.s32.totalorder %v777, 2
        %v783 = vxor.u32 %v773, 2147483648
        %v784 = vsel %vm782, %v783, %v774
        %v785 = vsel %vm778, %v781, %v784
        %v786 = vsel %vm775, nan, %v785
        %v787 = vand.u32 2147483647, %v308
        %vm788 = vcmp.le.f32.partialorder %v787, 0.7853982
        %vm789 = vcmp.lt.s32.totalorder %v308, 0
        %v790 = vand.u32 %v308, 2139095040
        %v791 = vshrl.u32 %v790, 23
        %v792 = vsub.s32 %v791, 127
        %v793 = vand.u32 2147483647, %v308
        %v794 = vand.u32 %v793, 8388607
        %v795 = vor.u32 %v794, 8388608
        %v796 = vsub.s32 0, %v795
        %v797 = vadd.s32 %v792, 1
        %vm798 = vcmp.gt.s32.totalorder %v797, 0
        %v799 = vsel %vm798, %v797, 0
        %v800 = vshrl.u32 %v799, 5
        %v801 = vand.u32 %v799, 31
        %v802 = vsub.s32 32, %v801
        %v803 = vshrl.u32 683565275, %v802
        %v804 = vshll.u32 683565275, %v801
        %v805 = vshrl.u32 2475754826, %v802
        %v806 = vor.u32 %v804, %v805
        %v807 = vshll.u32 2475754826, %v801
        %v808 = vshrl.u32 2131351028, %v802
        %v809 = vor.u32 %v807, %v808
        %v810 = vshll.u32 2131351028, %v801
        %v811 = vshrl.u32 2102212464, %v802
        %v812 = vor.u32 %v810, %v811
        %v813 = vshll.u32 2102212464, %v801
        %v814 = vshrl.u32 920167782, %v802
        %v815 = vor.u32 %v813, %v814
        %v816 = vshll.u32 920167782, %v801
        %v817 = vshrl.u32 1326507024, %v802
        %v818 = vor.u32 %v816, %v817
        %vm819 = vcmp.lt.s32.totalorder %v800, 1
        %vm820 = vcmp.lt.s32.totalorder %v800, 2
        %vm821 = vcmp.lt.s32.totalorder %v800, 3
        %vm822 = vcmp.lt.s32.totalorder %v800, 4
        %v823 = vsel %vm819, %v803, %v806
        %v824 = vsel %vm822, %v812, 2102212464
        %v825 = vsel %vm821, %v809, %v824
        %v826 = vsel %vm820, %v823, %v825
        %v827 = vsel %vm819, %v806, %v809
        %v828 = vsel %vm822, %v815, 920167782
        %v829 = vsel %vm821, %v812, %v828
        %v830 = vsel %vm820, %v827, %v829
        %v831 = vsel %vm819, %v809, %v812
        %v832 = vsel %vm822, %v818, 1326507024
        %v833 = vsel %vm821, %v815, %v832
        %v834 = vsel %vm820, %v831, %v833
        %v835 = vshll.u32 %v795, 8
        %v836 = vmul.u32.u64.compose %v835, %v834
        %v837 = vextract.low.u32 %v836
        %v838 = vextract.high.u32 %v836
        %v839 = vmul.u32.u64.compose %v835, %v830
        %v840 = vextract.low.u32 %v839
        %v841 = vextract.high.u32 %v839
        %v842 = vmul.u32 %v835, %v826
        %v843 = vadd.s32 %v838, %v840
        %vm844 = vc.u32 %v838, %v840
        %v845 = vadd.s32 %v841, 1
        %v846 = vsel %vm844, %v845, %v841
        %v847 = vadd.s32 %v842, %v846
        %v848 = vadd.s32 %v847, 536870912
        %v849 = vshrl.u32 %v848, 30
        %v850 = vshll.u32 %v849, 30
        %v851 = vsub.s32 %v847, %v850
        %vm852 = vcmp.lt.s32.totalorder %v851, 0
        %v853 = vsub.s32 0, %v851
        %v854 = vsel %vm852, %v853, %v851
        %v855 = vclz %v854
        %v856 = vsub.s32 %v855, 2
        %vm857 = vcmp.gt.s32.totalorder 0, %v856
        %v858 = vsel %vm857, 0, %v856
        %v859 = vsub.s32 32, %v858
        %v860 = vshll.u32 %v851, %v858
        %v861 = vshrl.u32 %v843, %v859
        %v862 = vor.u32 %v860, %v861
        %v863 = vsub.s32 4294967266, %v858
        %v864 = vadd.s32 %v863, 127
        %v865 = vshll.u32 %v864, 23
        %v866 = vor.u32 4788187, %v865
        %v867 = vand.u32 2147483647, %v866
        %v869 = vcvt.s32.f32 %v862
        %v870 = vmul.f32 %v869, %v867
        %v871 = vxor.u32 %v870, 2147483648
        %v872 = vsel %vm789, %v871, %v870
        %v873 = vsub.s32 4, %v849
        %v874 = vsel %vm789, %v873, %v849
        %v875 = vsel %vm788, %v308, %v872
        %v876 = vsel %vm788, 0, %v874
        %v877 = vcosq.f32.pop %v875
        %v878 = vsinq.f32.pop %v875
        %vm879 = vweird.f32 %v308
        %v880 = vadd.s32 %v876, 3
        %v881 = vand.u32 %v880, 3
        %vm882 = vcmp.lt.s32.totalorder %v881, 2
        %vm883 = vcmp.eq.s32.totalorder %v881, 0
        %v884 = vxor.u32 %v878, 2147483648
        %v885 = vsel %vm883, %v877, %v884
        %vm886 = vcmp.eq.s32.totalorder %v881, 2
        %v887 = vxor.u32 %v877, 2147483648
        %v888 = vsel %vm886, %v887, %v878
        %v889 = vsel %vm882, %v885, %v888
        %v890 = vsel %vm879, nan, %v889
        %v891 = vand.u32 2147483647, %v309
        %vm892 = vcmp.le.f32.partialorder %v891, 0.7853982
        %vm893 = vcmp.lt.s32.totalorder %v309, 0
        %v894 = vand.u32 %v309, 2139095040
        %v895 = vshrl.u32 %v894, 23
        %v896 = vsub.s32 %v895, 127
        %v897 = vand.u32 2147483647, %v309
        %v898 = vand.u32 %v897, 8388607
        %v899 = vor.u32 %v898, 8388608
        %v900 = vsub.s32 0, %v899
        %v901 = vadd.s32 %v896, 1
        %vm902 = vcmp.gt.s32.totalorder %v901, 0
        %v903 = vsel %vm902, %v901, 0
        %v904 = vshrl.u32 %v903, 5
        %v905 = vand.u32 %v903, 31
        %v906 = vsub.s32 32, %v905
        %v907 = vshrl.u32 683565275, %v906
        %v908 = vshll.u32 683565275, %v905
        %v909 = vshrl.u32 2475754826, %v906
        %v910 = vor.u32 %v908, %v909
        %v911 = vshll.u32 2475754826, %v905
        %v912 = vshrl.u32 2131351028, %v906
        %v913 = vor.u32 %v911, %v912
        %v914 = vshll.u32 2131351028, %v905
        %v915 = vshrl.u32 2102212464, %v906
        %v916 = vor.u32 %v914, %v915
        %v917 = vshll.u32 2102212464, %v905
        %v918 = vshrl.u32 920167782, %v906
        %v919 = vor.u32 %v917, %v918
        %v920 = vshll.u32 920167782, %v905
        %v921 = vshrl.u32 1326507024, %v906
        %v922 = vor.u32 %v920, %v921
        %vm923 = vcmp.lt.s32.totalorder %v904, 1
        %vm924 = vcmp.lt.s32.totalorder %v904, 2
        %vm925 = vcmp.lt.s32.totalorder %v904, 3
        %vm926 = vcmp.lt.s32.totalorder %v904, 4
        %v927 = vsel %vm923, %v907, %v910
        %v928 = vsel %vm926, %v916, 2102212464
        %v929 = vsel %vm925, %v913, %v928
        %v930 = vsel %vm924, %v927, %v929
        %v931 = vsel %vm923, %v910, %v913
        %v932 = vsel %vm926, %v919, 920167782
        %v933 = vsel %vm925, %v916, %v932
        %v934 = vsel %vm924, %v931, %v933
        %v935 = vsel %vm923, %v913, %v916
        %v936 = vsel %vm926, %v922, 1326507024
        %v937 = vsel %vm925, %v919, %v936
        %v938 = vsel %vm924, %v935, %v937
        %v939 = vshll.u32 %v899, 8
        %v940 = vmul.u32.u64.compose %v939, %v938
        %v941 = vextract.low.u32 %v940
        %v942 = vextract.high.u32 %v940
        %v943 = vmul.u32.u64.compose %v939, %v934
        %v944 = vextract.low.u32 %v943
        %v945 = vextract.high.u32 %v943
        %v946 = vmul.u32 %v939, %v930
        %v947 = vadd.s32 %v942, %v944
        %vm948 = vc.u32 %v942, %v944
        %v949 = vadd.s32 %v945, 1
        %v950 = vsel %vm948, %v949, %v945
        %v951 = vadd.s32 %v946, %v950
        %v952 = vadd.s32 %v951, 536870912
        %v953 = vshrl.u32 %v952, 30
        %v954 = vshll.u32 %v953, 30
        %v955 = vsub.s32 %v951, %v954
        %vm956 = vcmp.lt.s32.totalorder %v955, 0
        %v957 = vsub.s32 0, %v955
        %v958 = vsel %vm956, %v957, %v955
        %v959 = vclz %v958
        %v960 = vsub.s32 %v959, 2
        %vm961 = vcmp.gt.s32.totalorder 0, %v960
        %v962 = vsel %vm961, 0, %v960
        %v963 = vsub.s32 32, %v962
        %v964 = vshll.u32 %v955, %v962
        %v965 = vshrl.u32 %v947, %v963
        %v966 = vor.u32 %v964, %v965
        %v967 = vsub.s32 4294967266, %v962
        %v968 = vadd.s32 %v967, 127
        %v969 = vshll.u32 %v968, 23
        %v970 = vor.u32 4788187, %v969
        %v971 = vand.u32 2147483647, %v970
        %v973 = vcvt.s32.f32 %v966
        %v974 = vmul.f32 %v973, %v971
        %v975 = vxor.u32 %v974, 2147483648
        %v976 = vsel %vm893, %v975, %v974
        %v977 = vsub.s32 4, %v953
        %v978 = vsel %vm893, %v977, %v953
        %v979 = vsel %vm892, %v309, %v976
        %v980 = vsel %vm892, 0, %v978
        %v981 = vcosq.f32.pop %v979
        %v982 = vsinq.f32.pop %v979
        %vm983 = vweird.f32 %v309
        %v984 = vadd.s32 %v980, 3
        %v985 = vand.u32 %v984, 3
        %vm986 = vcmp.lt.s32.totalorder %v985, 2
        %vm987 = vcmp.eq.s32.totalorder %v985, 0
        %v988 = vxor.u32 %v982, 2147483648
        %v989 = vsel %vm987, %v981, %v988
        %vm990 = vcmp.eq.s32.totalorder %v985, 2
        %v991 = vxor.u32 %v981, 2147483648
        %v992 = vsel %vm990, %v991, %v982
        %v993 = vsel %vm986, %v989, %v992
        %v994 = vsel %vm983, nan, %v993
        %v995 = vand.u32 2147483647, %v310
        %vm996 = vcmp.le.f32.partialorder %v995, 0.7853982
        %vm997 = vcmp.lt.s32.totalorder %v310, 0
        %v998 = vand.u32 %v310, 2139095040
        %v999 = vshrl.u32 %v998, 23
        %v1000 = vsub.s32 %v999, 127
        %v1001 = vand.u32 2147483647, %v310
        %v1002 = vand.u32 %v1001, 8388607
        %v1003 = vor.u32 %v1002, 8388608
        %v1004 = vsub.s32 0, %v1003
        %v1005 = vadd.s32 %v1000, 1
        %vm1006 = vcmp.gt.s32.totalorder %v1005, 0
        %v1007 = vsel %vm1006, %v1005, 0
        %v1008 = vshrl.u32 %v1007, 5
        %v1009 = vand.u32 %v1007, 31
        %v1010 = vsub.s32 32, %v1009
        %v1011 = vshrl.u32 683565275, %v1010
        %v1012 = vshll.u32 683565275, %v1009
        %v1013 = vshrl.u32 2475754826, %v1010
        %v1014 = vor.u32 %v1012, %v1013
        %v1015 = vshll.u32 2475754826, %v1009
        %v1016 = vshrl.u32 2131351028, %v1010
        %v1017 = vor.u32 %v1015, %v1016
        %v1018 = vshll.u32 2131351028, %v1009
        %v1019 = vshrl.u32 2102212464, %v1010
        %v1020 = vor.u32 %v1018, %v1019
        %v1021 = vshll.u32 2102212464, %v1009
        %v1022 = vshrl.u32 920167782, %v1010
        %v1023 = vor.u32 %v1021, %v1022
        %v1024 = vshll.u32 920167782, %v1009
        %v1025 = vshrl.u32 1326507024, %v1010
        %v1026 = vor.u32 %v1024, %v1025
        %vm1027 = vcmp.lt.s32.totalorder %v1008, 1
        %vm1028 = vcmp.lt.s32.totalorder %v1008, 2
        %vm1029 = vcmp.lt.s32.totalorder %v1008, 3
        %vm1030 = vcmp.lt.s32.totalorder %v1008, 4
        %v1031 = vsel %vm1027, %v1011, %v1014
        %v1032 = vsel %vm1030, %v1020, 2102212464
        %v1033 = vsel %vm1029, %v1017, %v1032
        %v1034 = vsel %vm1028, %v1031, %v1033
        %v1035 = vsel %vm1027, %v1014, %v1017
        %v1036 = vsel %vm1030, %v1023, 920167782
        %v1037 = vsel %vm1029, %v1020, %v1036
        %v1038 = vsel %vm1028, %v1035, %v1037
        %v1039 = vsel %vm1027, %v1017, %v1020
        %v1040 = vsel %vm1030, %v1026, 1326507024
        %v1041 = vsel %vm1029, %v1023, %v1040
        %v1042 = vsel %vm1028, %v1039, %v1041
        %v1043 = vshll.u32 %v1003, 8
        %v1044 = vmul.u32.u64.compose %v1043, %v1042
        %v1045 = vextract.low.u32 %v1044
        %v1046 = vextract.high.u32 %v1044
        %v1047 = vmul.u32.u64.compose %v1043, %v1038
        %v1048 = vextract.low.u32 %v1047
        %v1049 = vextract.high.u32 %v1047
        %v1050 = vmul.u32 %v1043, %v1034
        %v1051 = vadd.s32 %v1046, %v1048
        %vm1052 = vc.u32 %v1046, %v1048
        %v1053 = vadd.s32 %v1049, 1
        %v1054 = vsel %vm1052, %v1053, %v1049
        %v1055 = vadd.s32 %v1050, %v1054
        %v1056 = vadd.s32 %v1055, 536870912
        %v1057 = vshrl.u32 %v1056, 30
        %v1058 = vshll.u32 %v1057, 30
        %v1059 = vsub.s32 %v1055, %v1058
        %vm1060 = vcmp.lt.s32.totalorder %v1059, 0
        %v1061 = vsub.s32 0, %v1059
        %v1062 = vsel %vm1060, %v1061, %v1059
        %v1063 = vclz %v1062
        %v1064 = vsub.s32 %v1063, 2
        %vm1065 = vcmp.gt.s32.totalorder 0, %v1064
        %v1066 = vsel %vm1065, 0, %v1064
        %v1067 = vsub.s32 32, %v1066
        %v1068 = vshll.u32 %v1059, %v1066
        %v1069 = vshrl.u32 %v1051, %v1067
        %v1070 = vor.u32 %v1068, %v1069
        %v1071 = vsub.s32 4294967266, %v1066
        %v1072 = vadd.s32 %v1071, 127
        %v1073 = vshll.u32 %v1072, 23
        %v1074 = vor.u32 4788187, %v1073
        %v1075 = vand.u32 2147483647, %v1074
        %v1077 = vcvt.s32.f32 %v1070
        %v1078 = vmul.f32 %v1077, %v1075
        %v1079 = vxor.u32 %v1078, 2147483648
        %v1080 = vsel %vm997, %v1079, %v1078
        %v1081 = vsub.s32 4, %v1057
        %v1082 = vsel %vm997, %v1081, %v1057
        %v1083 = vsel %vm996, %v310, %v1080
        %v1084 = vsel %vm996, 0, %v1082
        %v1085 = vcosq.f32.pop %v1083
        %v1086 = vsinq.f32.pop %v1083
        %vm1087 = vweird.f32 %v310
        %v1088 = vadd.s32 %v1084, 3
        %v1089 = vand.u32 %v1088, 3
        %vm1090 = vcmp.lt.s32.totalorder %v1089, 2
        %vm1091 = vcmp.eq.s32.totalorder %v1089, 0
        %v1092 = vxor.u32 %v1086, 2147483648
        %v1093 = vsel %vm1091, %v1085, %v1092
        %vm1094 = vcmp.eq.s32.totalorder %v1089, 2
        %v1095 = vxor.u32 %v1085, 2147483648
        %v1096 = vsel %vm1094, %v1095, %v1086
        %v1097 = vsel %vm1090, %v1093, %v1096
        %v1098 = vsel %vm1087, nan, %v1097
        %v1099 = vand.u32 2147483647, %v311
        %vm1100 = vcmp.le.f32.partialorder %v1099, 0.7853982
        %vm1101 = vcmp.lt.s32.totalorder %v311, 0
        %v1102 = vand.u32 %v311, 2139095040
        %v1103 = vshrl.u32 %v1102, 23
        %v1104 = vsub.s32 %v1103, 127
        %v1105 = vand.u32 2147483647, %v311
        %v1106 = vand.u32 %v1105, 8388607
        %v1107 = vor.u32 %v1106, 8388608
        %v1108 = vsub.s32 0, %v1107
        %v1109 = vadd.s32 %v1104, 1
        %vm1110 = vcmp.gt.s32.totalorder %v1109, 0
        %v1111 = vsel %vm1110, %v1109, 0
        %v1112 = vshrl.u32 %v1111, 5
        %v1113 = vand.u32 %v1111, 31
        %v1114 = vsub.s32 32, %v1113
        %v1115 = vshrl.u32 683565275, %v1114
        %v1116 = vshll.u32 683565275, %v1113
        %v1117 = vshrl.u32 2475754826, %v1114
        %v1118 = vor.u32 %v1116, %v1117
        %v1119 = vshll.u32 2475754826, %v1113
        %v1120 = vshrl.u32 2131351028, %v1114
        %v1121 = vor.u32 %v1119, %v1120
        %v1122 = vshll.u32 2131351028, %v1113
        %v1123 = vshrl.u32 2102212464, %v1114
        %v1124 = vor.u32 %v1122, %v1123
        %v1125 = vshll.u32 2102212464, %v1113
        %v1126 = vshrl.u32 920167782, %v1114
        %v1127 = vor.u32 %v1125, %v1126
        %v1128 = vshll.u32 920167782, %v1113
        %v1129 = vshrl.u32 1326507024, %v1114
        %v1130 = vor.u32 %v1128, %v1129
        %vm1131 = vcmp.lt.s32.totalorder %v1112, 1
        %vm1132 = vcmp.lt.s32.totalorder %v1112, 2
        %vm1133 = vcmp.lt.s32.totalorder %v1112, 3
        %vm1134 = vcmp.lt.s32.totalorder %v1112, 4
        %v1135 = vsel %vm1131, %v1115, %v1118
        %v1136 = vsel %vm1134, %v1124, 2102212464
        %v1137 = vsel %vm1133, %v1121, %v1136
        %v1138 = vsel %vm1132, %v1135, %v1137
        %v1139 = vsel %vm1131, %v1118, %v1121
        %v1140 = vsel %vm1134, %v1127, 920167782
        %v1141 = vsel %vm1133, %v1124, %v1140
        %v1142 = vsel %vm1132, %v1139, %v1141
        %v1143 = vsel %vm1131, %v1121, %v1124
        %v1144 = vsel %vm1134, %v1130, 1326507024
        %v1145 = vsel %vm1133, %v1127, %v1144
        %v1146 = vsel %vm1132, %v1143, %v1145
        %v1147 = vshll.u32 %v1107, 8
        %v1148 = vmul.u32.u64.compose %v1147, %v1146
        %v1149 = vextract.low.u32 %v1148
        %v1150 = vextract.high.u32 %v1148
        %v1151 = vmul.u32.u64.compose %v1147, %v1142
        %v1152 = vextract.low.u32 %v1151
        %v1153 = vextract.high.u32 %v1151
        %v1154 = vmul.u32 %v1147, %v1138
        %v1155 = vadd.s32 %v1150, %v1152
        %vm1156 = vc.u32 %v1150, %v1152
        %v1157 = vadd.s32 %v1153, 1
        %v1158 = vsel %vm1156, %v1157, %v1153
        %v1159 = vadd.s32 %v1154, %v1158
        %v1160 = vadd.s32 %v1159, 536870912
        %v1161 = vshrl.u32 %v1160, 30
        %v1162 = vshll.u32 %v1161, 30
        %v1163 = vsub.s32 %v1159, %v1162
        %vm1164 = vcmp.lt.s32.totalorder %v1163, 0
        %v1165 = vsub.s32 0, %v1163
        %v1166 = vsel %vm1164, %v1165, %v1163
        %v1167 = vclz %v1166
        %v1168 = vsub.s32 %v1167, 2
        %vm1169 = vcmp.gt.s32.totalorder 0, %v1168
        %v1170 = vsel %vm1169, 0, %v1168
        %v1171 = vsub.s32 32, %v1170
        %v1172 = vshll.u32 %v1163, %v1170
        %v1173 = vshrl.u32 %v1155, %v1171
        %v1174 = vor.u32 %v1172, %v1173
        %v1175 = vsub.s32 4294967266, %v1170
        %v1176 = vadd.s32 %v1175, 127
        %v1177 = vshll.u32 %v1176, 23
        %v1178 = vor.u32 4788187, %v1177
        %v1179 = vand.u32 2147483647, %v1178
        %v1181 = vcvt.s32.f32 %v1174
        %v1182 = vmul.f32 %v1181, %v1179
        %v1183 = vxor.u32 %v1182, 2147483648
        %v1184 = vsel %vm1101, %v1183, %v1182
        %v1185 = vsub.s32 4, %v1161
        %v1186 = vsel %vm1101, %v1185, %v1161
        %v1187 = vsel %vm1100, %v311, %v1184
        %v1188 = vsel %vm1100, 0, %v1186
        %v1189 = vcosq.f32.pop %v1187
        %v1190 = vsinq.f32.pop %v1187
        %vm1191 = vweird.f32 %v311
        %v1192 = vadd.s32 %v1188, 3
        %v1193 = vand.u32 %v1192, 3
        %vm1194 = vcmp.lt.s32.totalorder %v1193, 2
        %vm1195 = vcmp.eq.s32.totalorder %v1193, 0
        %v1196 = vxor.u32 %v1190, 2147483648
        %v1197 = vsel %vm1195, %v1189, %v1196
        %vm1198 = vcmp.eq.s32.totalorder %v1193, 2
        %v1199 = vxor.u32 %v1189, 2147483648
        %v1200 = vsel %vm1198, %v1199, %v1190
        %v1201 = vsel %vm1194, %v1197, %v1200
        %v1202 = vsel %vm1191, nan, %v1201
        %v1203 = vsel %vm370, %v474, %v362
        %v1204 = vsel %vm370, %v578, %v363
        %v1205 = vsel %vm370, %v682, %v364
        %v1206 = vsel %vm370, %v786, %v365
        %v1207 = vsel %vm370, %v890, %v366
        %v1208 = vsel %vm370, %v994, %v367
        %v1209 = vsel %vm370, %v1098, %v368
        %v1210 = vsel %vm370, %v1202, %v369
        %v1211 = vpack.c.bf16 %v1204, %v1203
        %v1212 = vpack.c.bf16 %v1206, %v1205
        %v1213 = vpack.c.bf16 %v1208, %v1207
        %v1214 = vpack.c.bf16 %v1210, %v1209
        %v1215 = vld [vmem:[%s2] sm:$0xf]
        %v1216 = vld [vmem:[%s2 + $0x4] sm:$0xf]
        %v1217 = vld [vmem:[%s2 + $0x8] sm:$0xf]
        %v1218 = vld [vmem:[%s2 + $0xc] sm:$0xf]
        %v1219 = vld [vmem:[%s2 + $0x10] sm:$0xf]
        %v1220 = vld [vmem:[%s2 + $0x14] sm:$0xf]
        %v1221 = vld [vmem:[%s2 + $0x18] sm:$0xf]
        %v1222 = vld [vmem:[%s2 + $0x1c] sm:$0xf]
        %v1223 = vld [vmem:[%s2 + $0x20] sm:$0xf]
        %v1224 = vld [vmem:[%s2 + $0x24] sm:$0xf]
        %v1225 = vld [vmem:[%s2 + $0x28] sm:$0xf]
        %v1226 = vld [vmem:[%s2 + $0x2c] sm:$0xf]
        %v1227 = vld [vmem:[%s2 + $0x30] sm:$0xf]
        %v1228 = vld [vmem:[%s2 + $0x34] sm:$0xf]
        %v1229 = vld [vmem:[%s2 + $0x38] sm:$0xf]
        %v1230 = vld [vmem:[%s2 + $0x3c] sm:$0xf]
        %vm1231 = vcmp.ge.s32.totalorder %v195, 32
        %vm1232 = vcmp.lt.s32.totalorder %v195, 64
        %vm1233 = vmand %vm1231, %vm1232
        %1234 = vset.pattern.permute.xlu0 2
        %1235 = vperm.xlu0 %1234, %v173
        %v1236 = vpop.permute.xlu0 %1235
        %1238 = vset.pattern.permute.xlu0 2
        %1239 = vperm.xlu0 %1238, %v174
        %v1240 = vpop.permute.xlu0 %1239
        %1242 = vset.pattern.permute.xlu0 2
        %1243 = vperm.xlu0 %1242, %v175
        %v1244 = vpop.permute.xlu0 %1243
        %1246 = vset.pattern.permute.xlu0 2
        %1247 = vperm.xlu0 %1246, %v176
        %v1248 = vpop.permute.xlu0 %1247
        %1250 = vset.pattern.permute.xlu0 2
        %1251 = vperm.xlu0 %1250, %v177
        %v1252 = vpop.permute.xlu0 %1251
        %1254 = vset.pattern.permute.xlu0 2
        %1255 = vperm.xlu0 %1254, %v178
        %v1256 = vpop.permute.xlu0 %1255
        %1258 = vset.pattern.permute.xlu0 2
        %1259 = vperm.xlu0 %1258, %v179
        %v1260 = vpop.permute.xlu0 %1259
        %1262 = vset.pattern.permute.xlu0 2
        %1263 = vperm.xlu0 %1262, %v180
        %v1264 = vpop.permute.xlu0 %1263
        %1266 = vset.pattern.permute.xlu0 3
        %1267 = vperm.xlu0 %1266, %v173
        %v1268 = vpop.permute.xlu0 %1267
        %1270 = vset.pattern.permute.xlu0 3
        %1271 = vperm.xlu0 %1270, %v174
        %v1272 = vpop.permute.xlu0 %1271
        %1274 = vset.pattern.permute.xlu0 3
        %1275 = vperm.xlu0 %1274, %v175
        %v1276 = vpop.permute.xlu0 %1275
        %1278 = vset.pattern.permute.xlu0 3
        %1279 = vperm.xlu0 %1278, %v176
        %v1280 = vpop.permute.xlu0 %1279
        %1282 = vset.pattern.permute.xlu0 3
        %1283 = vperm.xlu0 %1282, %v177
        %v1284 = vpop.permute.xlu0 %1283
        %1286 = vset.pattern.permute.xlu0 3
        %1287 = vperm.xlu0 %1286, %v178
        %v1288 = vpop.permute.xlu0 %1287
        %1290 = vset.pattern.permute.xlu0 3
        %1291 = vperm.xlu0 %1290, %v179
        %v1292 = vpop.permute.xlu0 %1291
        %1294 = vset.pattern.permute.xlu0 3
        %1295 = vperm.xlu0 %1294, %v180
        %v1296 = vpop.permute.xlu0 %1295
        %v1298 = vsel %vm1233, %v1236, %v1268
        %v1299 = vsel %vm1233, %v1240, %v1272
        %v1300 = vsel %vm1233, %v1244, %v1276
        %v1301 = vsel %vm1233, %v1248, %v1280
        %v1302 = vsel %vm1233, %v1252, %v1284
        %v1303 = vsel %vm1233, %v1256, %v1288
        %v1304 = vsel %vm1233, %v1260, %v1292
        %v1305 = vsel %vm1233, %v1264, %v1296
        %v1306 = vlaneseq
        %v1307 = vshrl.u32 %v1306, 7
        %v1308 = vsub.s32 0, %v1307
        %v1309 = vrot.slane %v192, %v1308
        %v1310 = vmul.f32 %v1298, %v1309
        %v1311 = vmul.f32 %v1299, %v1309
        %v1312 = vmul.f32 %v1300, %v1309
        %v1313 = vmul.f32 %v1301, %v1309
        %v1314 = vmul.f32 %v1302, %v1309
        %v1315 = vmul.f32 %v1303, %v1309
        %v1316 = vmul.f32 %v1304, %v1309
        %v1317 = vmul.f32 %v1305, %v1309
        %v1318 = vlaneseq
        %v1319 = vshrl.u32 %v1318, 7
        %v1320 = vsub.s32 0, %v1319
        %v1321 = vrot.slane %v193, %v1320
        %v1322 = vadd.f32 %v1310, %v1321
        %v1323 = vadd.f32 %v1311, %v1321
        %v1324 = vadd.f32 %v1312, %v1321
        %v1325 = vadd.f32 %v1313, %v1321
        %v1326 = vadd.f32 %v1314, %v1321
        %v1327 = vadd.f32 %v1315, %v1321
        %v1328 = vadd.f32 %v1316, %v1321
        %v1329 = vadd.f32 %v1317, %v1321
        %vm1330 = vcmp.eq.s32.totalorder %v195, 32
        %vm1331 = vcmp.eq.s32.totalorder %v195, 64
        %vm1332 = vmor %vm1330, %vm1331
        %v1333 = vand.u32 2147483647, %v1322
        %vm1334 = vcmp.le.f32.partialorder %v1333, 0.7853982
        %vm1335 = vcmp.lt.s32.totalorder %v1322, 0
        %v1336 = vand.u32 %v1322, 2139095040
        %v1337 = vshrl.u32 %v1336, 23
        %v1338 = vsub.s32 %v1337, 127
        %v1339 = vand.u32 2147483647, %v1322
        %v1340 = vand.u32 %v1339, 8388607
        %v1341 = vor.u32 %v1340, 8388608
        %v1342 = vsub.s32 0, %v1341
        %v1343 = vadd.s32 %v1338, 1
        %vm1344 = vcmp.gt.s32.totalorder %v1343, 0
        %v1345 = vsel %vm1344, %v1343, 0
        %v1346 = vshrl.u32 %v1345, 5
        %v1347 = vand.u32 %v1345, 31
        %v1348 = vsub.s32 32, %v1347
        %v1349 = vshrl.u32 683565275, %v1348
        %v1350 = vshll.u32 683565275, %v1347
        %v1351 = vshrl.u32 2475754826, %v1348
        %v1352 = vor.u32 %v1350, %v1351
        %v1353 = vshll.u32 2475754826, %v1347
        %v1354 = vshrl.u32 2131351028, %v1348
        %v1355 = vor.u32 %v1353, %v1354
        %v1356 = vshll.u32 2131351028, %v1347
        %v1357 = vshrl.u32 2102212464, %v1348
        %v1358 = vor.u32 %v1356, %v1357
        %v1359 = vshll.u32 2102212464, %v1347
        %v1360 = vshrl.u32 920167782, %v1348
        %v1361 = vor.u32 %v1359, %v1360
        %v1362 = vshll.u32 920167782, %v1347
        %v1363 = vshrl.u32 1326507024, %v1348
        %v1364 = vor.u32 %v1362, %v1363
        %vm1365 = vcmp.lt.s32.totalorder %v1346, 1
        %vm1366 = vcmp.lt.s32.totalorder %v1346, 2
        %vm1367 = vcmp.lt.s32.totalorder %v1346, 3
        %vm1368 = vcmp.lt.s32.totalorder %v1346, 4
        %v1369 = vsel %vm1365, %v1349, %v1352
        %v1370 = vsel %vm1368, %v1358, 2102212464
        %v1371 = vsel %vm1367, %v1355, %v1370
        %v1372 = vsel %vm1366, %v1369, %v1371
        %v1373 = vsel %vm1365, %v1352, %v1355
        %v1374 = vsel %vm1368, %v1361, 920167782
        %v1375 = vsel %vm1367, %v1358, %v1374
        %v1376 = vsel %vm1366, %v1373, %v1375
        %v1377 = vsel %vm1365, %v1355, %v1358
        %v1378 = vsel %vm1368, %v1364, 1326507024
        %v1379 = vsel %vm1367, %v1361, %v1378
        %v1380 = vsel %vm1366, %v1377, %v1379
        %v1381 = vshll.u32 %v1341, 8
        %v1382 = vmul.u32.u64.compose %v1381, %v1380
        %v1383 = vextract.low.u32 %v1382
        %v1384 = vextract.high.u32 %v1382
        %v1385 = vmul.u32.u64.compose %v1381, %v1376
        %v1386 = vextract.low.u32 %v1385
        %v1387 = vextract.high.u32 %v1385
        %v1388 = vmul.u32 %v1381, %v1372
        %v1389 = vadd.s32 %v1384, %v1386
        %vm1390 = vc.u32 %v1384, %v1386
        %v1391 = vadd.s32 %v1387, 1
        %v1392 = vsel %vm1390, %v1391, %v1387
        %v1393 = vadd.s32 %v1388, %v1392
        %v1394 = vadd.s32 %v1393, 536870912
        %v1395 = vshrl.u32 %v1394, 30
        %v1396 = vshll.u32 %v1395, 30
        %v1397 = vsub.s32 %v1393, %v1396
        %vm1398 = vcmp.lt.s32.totalorder %v1397, 0
        %v1399 = vsub.s32 0, %v1397
        %v1400 = vsel %vm1398, %v1399, %v1397
        %v1401 = vclz %v1400
        %v1402 = vsub.s32 %v1401, 2
        %vm1403 = vcmp.gt.s32.totalorder 0, %v1402
        %v1404 = vsel %vm1403, 0, %v1402
        %v1405 = vsub.s32 32, %v1404
        %v1406 = vshll.u32 %v1397, %v1404
        %v1407 = vshrl.u32 %v1389, %v1405
        %v1408 = vor.u32 %v1406, %v1407
        %v1409 = vsub.s32 4294967266, %v1404
        %v1410 = vadd.s32 %v1409, 127
        %v1411 = vshll.u32 %v1410, 23
        %v1412 = vor.u32 4788187, %v1411
        %v1413 = vand.u32 2147483647, %v1412
        %v1415 = vcvt.s32.f32 %v1408
        %v1416 = vmul.f32 %v1415, %v1413
        %v1417 = vxor.u32 %v1416, 2147483648
        %v1418 = vsel %vm1335, %v1417, %v1416
        %v1419 = vsub.s32 4, %v1395
        %v1420 = vsel %vm1335, %v1419, %v1395
        %v1421 = vsel %vm1334, %v1322, %v1418
        %v1422 = vsel %vm1334, 0, %v1420
        %v1423 = vcosq.f32.pop %v1421
        %v1424 = vsinq.f32.pop %v1421
        %vm1425 = vweird.f32 %v1322
        %v1426 = vadd.s32 %v1422, 3
        %v1427 = vand.u32 %v1426, 3
        %vm1428 = vcmp.lt.s32.totalorder %v1427, 2
        %vm1429 = vcmp.eq.s32.totalorder %v1427, 0
        %v1430 = vxor.u32 %v1424, 2147483648
        %v1431 = vsel %vm1429, %v1423, %v1430
        %vm1432 = vcmp.eq.s32.totalorder %v1427, 2
        %v1433 = vxor.u32 %v1423, 2147483648
        %v1434 = vsel %vm1432, %v1433, %v1424
        %v1435 = vsel %vm1428, %v1431, %v1434
        %v1436 = vsel %vm1425, nan, %v1435
        %v1437 = vand.u32 2147483647, %v1323
        %vm1438 = vcmp.le.f32.partialorder %v1437, 0.7853982
        %vm1439 = vcmp.lt.s32.totalorder %v1323, 0
        %v1440 = vand.u32 %v1323, 2139095040
        %v1441 = vshrl.u32 %v1440, 23
        %v1442 = vsub.s32 %v1441, 127
        %v1443 = vand.u32 2147483647, %v1323
        %v1444 = vand.u32 %v1443, 8388607
        %v1445 = vor.u32 %v1444, 8388608
        %v1446 = vsub.s32 0, %v1445
        %v1447 = vadd.s32 %v1442, 1
        %vm1448 = vcmp.gt.s32.totalorder %v1447, 0
        %v1449 = vsel %vm1448, %v1447, 0
        %v1450 = vshrl.u32 %v1449, 5
        %v1451 = vand.u32 %v1449, 31
        %v1452 = vsub.s32 32, %v1451
        %v1453 = vshrl.u32 683565275, %v1452
        %v1454 = vshll.u32 683565275, %v1451
        %v1455 = vshrl.u32 2475754826, %v1452
        %v1456 = vor.u32 %v1454, %v1455
        %v1457 = vshll.u32 2475754826, %v1451
        %v1458 = vshrl.u32 2131351028, %v1452
        %v1459 = vor.u32 %v1457, %v1458
        %v1460 = vshll.u32 2131351028, %v1451
        %v1461 = vshrl.u32 2102212464, %v1452
        %v1462 = vor.u32 %v1460, %v1461
        %v1463 = vshll.u32 2102212464, %v1451
        %v1464 = vshrl.u32 920167782, %v1452
        %v1465 = vor.u32 %v1463, %v1464
        %v1466 = vshll.u32 920167782, %v1451
        %v1467 = vshrl.u32 1326507024, %v1452
        %v1468 = vor.u32 %v1466, %v1467
        %vm1469 = vcmp.lt.s32.totalorder %v1450, 1
        %vm1470 = vcmp.lt.s32.totalorder %v1450, 2
        %vm1471 = vcmp.lt.s32.totalorder %v1450, 3
        %vm1472 = vcmp.lt.s32.totalorder %v1450, 4
        %v1473 = vsel %vm1469, %v1453, %v1456
        %v1474 = vsel %vm1472, %v1462, 2102212464
        %v1475 = vsel %vm1471, %v1459, %v1474
        %v1476 = vsel %vm1470, %v1473, %v1475
        %v1477 = vsel %vm1469, %v1456, %v1459
        %v1478 = vsel %vm1472, %v1465, 920167782
        %v1479 = vsel %vm1471, %v1462, %v1478
        %v1480 = vsel %vm1470, %v1477, %v1479
        %v1481 = vsel %vm1469, %v1459, %v1462
        %v1482 = vsel %vm1472, %v1468, 1326507024
        %v1483 = vsel %vm1471, %v1465, %v1482
        %v1484 = vsel %vm1470, %v1481, %v1483
        %v1485 = vshll.u32 %v1445, 8
        %v1486 = vmul.u32.u64.compose %v1485, %v1484
        %v1487 = vextract.low.u32 %v1486
        %v1488 = vextract.high.u32 %v1486
        %v1489 = vmul.u32.u64.compose %v1485, %v1480
        %v1490 = vextract.low.u32 %v1489
        %v1491 = vextract.high.u32 %v1489
        %v1492 = vmul.u32 %v1485, %v1476
        %v1493 = vadd.s32 %v1488, %v1490
        %vm1494 = vc.u32 %v1488, %v1490
        %v1495 = vadd.s32 %v1491, 1
        %v1496 = vsel %vm1494, %v1495, %v1491
        %v1497 = vadd.s32 %v1492, %v1496
        %v1498 = vadd.s32 %v1497, 536870912
        %v1499 = vshrl.u32 %v1498, 30
        %v1500 = vshll.u32 %v1499, 30
        %v1501 = vsub.s32 %v1497, %v1500
        %vm1502 = vcmp.lt.s32.totalorder %v1501, 0
        %v1503 = vsub.s32 0, %v1501
        %v1504 = vsel %vm1502, %v1503, %v1501
        %v1505 = vclz %v1504
        %v1506 = vsub.s32 %v1505, 2
        %vm1507 = vcmp.gt.s32.totalorder 0, %v1506
        %v1508 = vsel %vm1507, 0, %v1506
        %v1509 = vsub.s32 32, %v1508
        %v1510 = vshll.u32 %v1501, %v1508
        %v1511 = vshrl.u32 %v1493, %v1509
        %v1512 = vor.u32 %v1510, %v1511
        %v1513 = vsub.s32 4294967266, %v1508
        %v1514 = vadd.s32 %v1513, 127
        %v1515 = vshll.u32 %v1514, 23
        %v1516 = vor.u32 4788187, %v1515
        %v1517 = vand.u32 2147483647, %v1516
        %v1519 = vcvt.s32.f32 %v1512
        %v1520 = vmul.f32 %v1519, %v1517
        %v1521 = vxor.u32 %v1520, 2147483648
        %v1522 = vsel %vm1439, %v1521, %v1520
        %v1523 = vsub.s32 4, %v1499
        %v1524 = vsel %vm1439, %v1523, %v1499
        %v1525 = vsel %vm1438, %v1323, %v1522
        %v1526 = vsel %vm1438, 0, %v1524
        %v1527 = vcosq.f32.pop %v1525
        %v1528 = vsinq.f32.pop %v1525
        %vm1529 = vweird.f32 %v1323
        %v1530 = vadd.s32 %v1526, 3
        %v1531 = vand.u32 %v1530, 3
        %vm1532 = vcmp.lt.s32.totalorder %v1531, 2
        %vm1533 = vcmp.eq.s32.totalorder %v1531, 0
        %v1534 = vxor.u32 %v1528, 2147483648
        %v1535 = vsel %vm1533, %v1527, %v1534
        %vm1536 = vcmp.eq.s32.totalorder %v1531, 2
        %v1537 = vxor.u32 %v1527, 2147483648
        %v1538 = vsel %vm1536, %v1537, %v1528
        %v1539 = vsel %vm1532, %v1535, %v1538
        %v1540 = vsel %vm1529, nan, %v1539
        %v1541 = vand.u32 2147483647, %v1324
        %vm1542 = vcmp.le.f32.partialorder %v1541, 0.7853982
        %vm1543 = vcmp.lt.s32.totalorder %v1324, 0
        %v1544 = vand.u32 %v1324, 2139095040
        %v1545 = vshrl.u32 %v1544, 23
        %v1546 = vsub.s32 %v1545, 127
        %v1547 = vand.u32 2147483647, %v1324
        %v1548 = vand.u32 %v1547, 8388607
        %v1549 = vor.u32 %v1548, 8388608
        %v1550 = vsub.s32 0, %v1549
        %v1551 = vadd.s32 %v1546, 1
        %vm1552 = vcmp.gt.s32.totalorder %v1551, 0
        %v1553 = vsel %vm1552, %v1551, 0
        %v1554 = vshrl.u32 %v1553, 5
        %v1555 = vand.u32 %v1553, 31
        %v1556 = vsub.s32 32, %v1555
        %v1557 = vshrl.u32 683565275, %v1556
        %v1558 = vshll.u32 683565275, %v1555
        %v1559 = vshrl.u32 2475754826, %v1556
        %v1560 = vor.u32 %v1558, %v1559
        %v1561 = vshll.u32 2475754826, %v1555
        %v1562 = vshrl.u32 2131351028, %v1556
        %v1563 = vor.u32 %v1561, %v1562
        %v1564 = vshll.u32 2131351028, %v1555
        %v1565 = vshrl.u32 2102212464, %v1556
        %v1566 = vor.u32 %v1564, %v1565
        %v1567 = vshll.u32 2102212464, %v1555
        %v1568 = vshrl.u32 920167782, %v1556
        %v1569 = vor.u32 %v1567, %v1568
        %v1570 = vshll.u32 920167782, %v1555
        %v1571 = vshrl.u32 1326507024, %v1556
        %v1572 = vor.u32 %v1570, %v1571
        %vm1573 = vcmp.lt.s32.totalorder %v1554, 1
        %vm1574 = vcmp.lt.s32.totalorder %v1554, 2
        %vm1575 = vcmp.lt.s32.totalorder %v1554, 3
        %vm1576 = vcmp.lt.s32.totalorder %v1554, 4
        %v1577 = vsel %vm1573, %v1557, %v1560
        %v1578 = vsel %vm1576, %v1566, 2102212464
        %v1579 = vsel %vm1575, %v1563, %v1578
        %v1580 = vsel %vm1574, %v1577, %v1579
        %v1581 = vsel %vm1573, %v1560, %v1563
        %v1582 = vsel %vm1576, %v1569, 920167782
        %v1583 = vsel %vm1575, %v1566, %v1582
        %v1584 = vsel %vm1574, %v1581, %v1583
        %v1585 = vsel %vm1573, %v1563, %v1566
        %v1586 = vsel %vm1576, %v1572, 1326507024
        %v1587 = vsel %vm1575, %v1569, %v1586
        %v1588 = vsel %vm1574, %v1585, %v1587
        %v1589 = vshll.u32 %v1549, 8
        %v1590 = vmul.u32.u64.compose %v1589, %v1588
        %v1591 = vextract.low.u32 %v1590
        %v1592 = vextract.high.u32 %v1590
        %v1593 = vmul.u32.u64.compose %v1589, %v1584
        %v1594 = vextract.low.u32 %v1593
        %v1595 = vextract.high.u32 %v1593
        %v1596 = vmul.u32 %v1589, %v1580
        %v1597 = vadd.s32 %v1592, %v1594
        %vm1598 = vc.u32 %v1592, %v1594
        %v1599 = vadd.s32 %v1595, 1
        %v1600 = vsel %vm1598, %v1599, %v1595
        %v1601 = vadd.s32 %v1596, %v1600
        %v1602 = vadd.s32 %v1601, 536870912
        %v1603 = vshrl.u32 %v1602, 30
        %v1604 = vshll.u32 %v1603, 30
        %v1605 = vsub.s32 %v1601, %v1604
        %vm1606 = vcmp.lt.s32.totalorder %v1605, 0
        %v1607 = vsub.s32 0, %v1605
        %v1608 = vsel %vm1606, %v1607, %v1605
        %v1609 = vclz %v1608
        %v1610 = vsub.s32 %v1609, 2
        %vm1611 = vcmp.gt.s32.totalorder 0, %v1610
        %v1612 = vsel %vm1611, 0, %v1610
        %v1613 = vsub.s32 32, %v1612
        %v1614 = vshll.u32 %v1605, %v1612
        %v1615 = vshrl.u32 %v1597, %v1613
        %v1616 = vor.u32 %v1614, %v1615
        %v1617 = vsub.s32 4294967266, %v1612
        %v1618 = vadd.s32 %v1617, 127
        %v1619 = vshll.u32 %v1618, 23
        %v1620 = vor.u32 4788187, %v1619
        %v1621 = vand.u32 2147483647, %v1620
        %v1623 = vcvt.s32.f32 %v1616
        %v1624 = vmul.f32 %v1623, %v1621
        %v1625 = vxor.u32 %v1624, 2147483648
        %v1626 = vsel %vm1543, %v1625, %v1624
        %v1627 = vsub.s32 4, %v1603
        %v1628 = vsel %vm1543, %v1627, %v1603
        %v1629 = vsel %vm1542, %v1324, %v1626
        %v1630 = vsel %vm1542, 0, %v1628
        %v1631 = vcosq.f32.pop %v1629
        %v1632 = vsinq.f32.pop %v1629
        %vm1633 = vweird.f32 %v1324
        %v1634 = vadd.s32 %v1630, 3
        %v1635 = vand.u32 %v1634, 3
        %vm1636 = vcmp.lt.s32.totalorder %v1635, 2
        %vm1637 = vcmp.eq.s32.totalorder %v1635, 0
        %v1638 = vxor.u32 %v1632, 2147483648
        %v1639 = vsel %vm1637, %v1631, %v1638
        %vm1640 = vcmp.eq.s32.totalorder %v1635, 2
        %v1641 = vxor.u32 %v1631, 2147483648
        %v1642 = vsel %vm1640, %v1641, %v1632
        %v1643 = vsel %vm1636, %v1639, %v1642
        %v1644 = vsel %vm1633, nan, %v1643
        %v1645 = vand.u32 2147483647, %v1325
        %vm1646 = vcmp.le.f32.partialorder %v1645, 0.7853982
        %vm1647 = vcmp.lt.s32.totalorder %v1325, 0
        %v1648 = vand.u32 %v1325, 2139095040
        %v1649 = vshrl.u32 %v1648, 23
        %v1650 = vsub.s32 %v1649, 127
        %v1651 = vand.u32 2147483647, %v1325
        %v1652 = vand.u32 %v1651, 8388607
        %v1653 = vor.u32 %v1652, 8388608
        %v1654 = vsub.s32 0, %v1653
        %v1655 = vadd.s32 %v1650, 1
        %vm1656 = vcmp.gt.s32.totalorder %v1655, 0
        %v1657 = vsel %vm1656, %v1655, 0
        %v1658 = vshrl.u32 %v1657, 5
        %v1659 = vand.u32 %v1657, 31
        %v1660 = vsub.s32 32, %v1659
        %v1661 = vshrl.u32 683565275, %v1660
        %v1662 = vshll.u32 683565275, %v1659
        %v1663 = vshrl.u32 2475754826, %v1660
        %v1664 = vor.u32 %v1662, %v1663
        %v1665 = vshll.u32 2475754826, %v1659
        %v1666 = vshrl.u32 2131351028, %v1660
        %v1667 = vor.u32 %v1665, %v1666
        %v1668 = vshll.u32 2131351028, %v1659
        %v1669 = vshrl.u32 2102212464, %v1660
        %v1670 = vor.u32 %v1668, %v1669
        %v1671 = vshll.u32 2102212464, %v1659
        %v1672 = vshrl.u32 920167782, %v1660
        %v1673 = vor.u32 %v1671, %v1672
        %v1674 = vshll.u32 920167782, %v1659
        %v1675 = vshrl.u32 1326507024, %v1660
        %v1676 = vor.u32 %v1674, %v1675
        %vm1677 = vcmp.lt.s32.totalorder %v1658, 1
        %vm1678 = vcmp.lt.s32.totalorder %v1658, 2
        %vm1679 = vcmp.lt.s32.totalorder %v1658, 3
        %vm1680 = vcmp.lt.s32.totalorder %v1658, 4
        %v1681 = vsel %vm1677, %v1661, %v1664
        %v1682 = vsel %vm1680, %v1670, 2102212464
        %v1683 = vsel %vm1679, %v1667, %v1682
        %v1684 = vsel %vm1678, %v1681, %v1683
        %v1685 = vsel %vm1677, %v1664, %v1667
        %v1686 = vsel %vm1680, %v1673, 920167782
        %v1687 = vsel %vm1679, %v1670, %v1686
        %v1688 = vsel %vm1678, %v1685, %v1687
        %v1689 = vsel %vm1677, %v1667, %v1670
        %v1690 = vsel %vm1680, %v1676, 1326507024
        %v1691 = vsel %vm1679, %v1673, %v1690
        %v1692 = vsel %vm1678, %v1689, %v1691
        %v1693 = vshll.u32 %v1653, 8
        %v1694 = vmul.u32.u64.compose %v1693, %v1692
        %v1695 = vextract.low.u32 %v1694
        %v1696 = vextract.high.u32 %v1694
        %v1697 = vmul.u32.u64.compose %v1693, %v1688
        %v1698 = vextract.low.u32 %v1697
        %v1699 = vextract.high.u32 %v1697
        %v1700 = vmul.u32 %v1693, %v1684
        %v1701 = vadd.s32 %v1696, %v1698
        %vm1702 = vc.u32 %v1696, %v1698
        %v1703 = vadd.s32 %v1699, 1
        %v1704 = vsel %vm1702, %v1703, %v1699
        %v1705 = vadd.s32 %v1700, %v1704
        %v1706 = vadd.s32 %v1705, 536870912
        %v1707 = vshrl.u32 %v1706, 30
        %v1708 = vshll.u32 %v1707, 30
        %v1709 = vsub.s32 %v1705, %v1708
        %vm1710 = vcmp.lt.s32.totalorder %v1709, 0
        %v1711 = vsub.s32 0, %v1709
        %v1712 = vsel %vm1710, %v1711, %v1709
        %v1713 = vclz %v1712
        %v1714 = vsub.s32 %v1713, 2
        %vm1715 = vcmp.gt.s32.totalorder 0, %v1714
        %v1716 = vsel %vm1715, 0, %v1714
        %v1717 = vsub.s32 32, %v1716
        %v1718 = vshll.u32 %v1709, %v1716
        %v1719 = vshrl.u32 %v1701, %v1717
        %v1720 = vor.u32 %v1718, %v1719
        %v1721 = vsub.s32 4294967266, %v1716
        %v1722 = vadd.s32 %v1721, 127
        %v1723 = vshll.u32 %v1722, 23
        %v1724 = vor.u32 4788187, %v1723
        %v1725 = vand.u32 2147483647, %v1724
        %v1727 = vcvt.s32.f32 %v1720
        %v1728 = vmul.f32 %v1727, %v1725
        %v1729 = vxor.u32 %v1728, 2147483648
        %v1730 = vsel %vm1647, %v1729, %v1728
        %v1731 = vsub.s32 4, %v1707
        %v1732 = vsel %vm1647, %v1731, %v1707
        %v1733 = vsel %vm1646, %v1325, %v1730
        %v1734 = vsel %vm1646, 0, %v1732
        %v1735 = vcosq.f32.pop %v1733
        %v1736 = vsinq.f32.pop %v1733
        %vm1737 = vweird.f32 %v1325
        %v1738 = vadd.s32 %v1734, 3
        %v1739 = vand.u32 %v1738, 3
        %vm1740 = vcmp.lt.s32.totalorder %v1739, 2
        %vm1741 = vcmp.eq.s32.totalorder %v1739, 0
        %v1742 = vxor.u32 %v1736, 2147483648
        %v1743 = vsel %vm1741, %v1735, %v1742
        %vm1744 = vcmp.eq.s32.totalorder %v1739, 2
        %v1745 = vxor.u32 %v1735, 2147483648
        %v1746 = vsel %vm1744, %v1745, %v1736
        %v1747 = vsel %vm1740, %v1743, %v1746
        %v1748 = vsel %vm1737, nan, %v1747
        %v1749 = vand.u32 2147483647, %v1326
        %vm1750 = vcmp.le.f32.partialorder %v1749, 0.7853982
        %vm1751 = vcmp.lt.s32.totalorder %v1326, 0
        %v1752 = vand.u32 %v1326, 2139095040
        %v1753 = vshrl.u32 %v1752, 23
        %v1754 = vsub.s32 %v1753, 127
        %v1755 = vand.u32 2147483647, %v1326
        %v1756 = vand.u32 %v1755, 8388607
        %v1757 = vor.u32 %v1756, 8388608
        %v1758 = vsub.s32 0, %v1757
        %v1759 = vadd.s32 %v1754, 1
        %vm1760 = vcmp.gt.s32.totalorder %v1759, 0
        %v1761 = vsel %vm1760, %v1759, 0
        %v1762 = vshrl.u32 %v1761, 5
        %v1763 = vand.u32 %v1761, 31
        %v1764 = vsub.s32 32, %v1763
        %v1765 = vshrl.u32 683565275, %v1764
        %v1766 = vshll.u32 683565275, %v1763
        %v1767 = vshrl.u32 2475754826, %v1764
        %v1768 = vor.u32 %v1766, %v1767
        %v1769 = vshll.u32 2475754826, %v1763
        %v1770 = vshrl.u32 2131351028, %v1764
        %v1771 = vor.u32 %v1769, %v1770
        %v1772 = vshll.u32 2131351028, %v1763
        %v1773 = vshrl.u32 2102212464, %v1764
        %v1774 = vor.u32 %v1772, %v1773
        %v1775 = vshll.u32 2102212464, %v1763
        %v1776 = vshrl.u32 920167782, %v1764
        %v1777 = vor.u32 %v1775, %v1776
        %v1778 = vshll.u32 920167782, %v1763
        %v1779 = vshrl.u32 1326507024, %v1764
        %v1780 = vor.u32 %v1778, %v1779
        %vm1781 = vcmp.lt.s32.totalorder %v1762, 1
        %vm1782 = vcmp.lt.s32.totalorder %v1762, 2
        %vm1783 = vcmp.lt.s32.totalorder %v1762, 3
        %vm1784 = vcmp.lt.s32.totalorder %v1762, 4
        %v1785 = vsel %vm1781, %v1765, %v1768
        %v1786 = vsel %vm1784, %v1774, 2102212464
        %v1787 = vsel %vm1783, %v1771, %v1786
        %v1788 = vsel %vm1782, %v1785, %v1787
        %v1789 = vsel %vm1781, %v1768, %v1771
        %v1790 = vsel %vm1784, %v1777, 920167782
        %v1791 = vsel %vm1783, %v1774, %v1790
        %v1792 = vsel %vm1782, %v1789, %v1791
        %v1793 = vsel %vm1781, %v1771, %v1774
        %v1794 = vsel %vm1784, %v1780, 1326507024
        %v1795 = vsel %vm1783, %v1777, %v1794
        %v1796 = vsel %vm1782, %v1793, %v1795
        %v1797 = vshll.u32 %v1757, 8
        %v1798 = vmul.u32.u64.compose %v1797, %v1796
        %v1799 = vextract.low.u32 %v1798
        %v1800 = vextract.high.u32 %v1798
        %v1801 = vmul.u32.u64.compose %v1797, %v1792
        %v1802 = vextract.low.u32 %v1801
        %v1803 = vextract.high.u32 %v1801
        %v1804 = vmul.u32 %v1797, %v1788
        %v1805 = vadd.s32 %v1800, %v1802
        %vm1806 = vc.u32 %v1800, %v1802
        %v1807 = vadd.s32 %v1803, 1
        %v1808 = vsel %vm1806, %v1807, %v1803
        %v1809 = vadd.s32 %v1804, %v1808
        %v1810 = vadd.s32 %v1809, 536870912
        %v1811 = vshrl.u32 %v1810, 30
        %v1812 = vshll.u32 %v1811, 30
        %v1813 = vsub.s32 %v1809, %v1812
        %vm1814 = vcmp.lt.s32.totalorder %v1813, 0
        %v1815 = vsub.s32 0, %v1813
        %v1816 = vsel %vm1814, %v1815, %v1813
        %v1817 = vclz %v1816
        %v1818 = vsub.s32 %v1817, 2
        %vm1819 = vcmp.gt.s32.totalorder 0, %v1818
        %v1820 = vsel %vm1819, 0, %v1818
        %v1821 = vsub.s32 32, %v1820
        %v1822 = vshll.u32 %v1813, %v1820
        %v1823 = vshrl.u32 %v1805, %v1821
        %v1824 = vor.u32 %v1822, %v1823
        %v1825 = vsub.s32 4294967266, %v1820
        %v1826 = vadd.s32 %v1825, 127
        %v1827 = vshll.u32 %v1826, 23
        %v1828 = vor.u32 4788187, %v1827
        %v1829 = vand.u32 2147483647, %v1828
        %v1831 = vcvt.s32.f32 %v1824
        %v1832 = vmul.f32 %v1831, %v1829
        %v1833 = vxor.u32 %v1832, 2147483648
        %v1834 = vsel %vm1751, %v1833, %v1832
        %v1835 = vsub.s32 4, %v1811
        %v1836 = vsel %vm1751, %v1835, %v1811
        %v1837 = vsel %vm1750, %v1326, %v1834
        %v1838 = vsel %vm1750, 0, %v1836
        %v1839 = vcosq.f32.pop %v1837
        %v1840 = vsinq.f32.pop %v1837
        %vm1841 = vweird.f32 %v1326
        %v1842 = vadd.s32 %v1838, 3
        %v1843 = vand.u32 %v1842, 3
        %vm1844 = vcmp.lt.s32.totalorder %v1843, 2
        %vm1845 = vcmp.eq.s32.totalorder %v1843, 0
        %v1846 = vxor.u32 %v1840, 2147483648
        %v1847 = vsel %vm1845, %v1839, %v1846
        %vm1848 = vcmp.eq.s32.totalorder %v1843, 2
        %v1849 = vxor.u32 %v1839, 2147483648
        %v1850 = vsel %vm1848, %v1849, %v1840
        %v1851 = vsel %vm1844, %v1847, %v1850
        %v1852 = vsel %vm1841, nan, %v1851
        %v1853 = vand.u32 2147483647, %v1327
        %vm1854 = vcmp.le.f32.partialorder %v1853, 0.7853982
        %vm1855 = vcmp.lt.s32.totalorder %v1327, 0
        %v1856 = vand.u32 %v1327, 2139095040
        %v1857 = vshrl.u32 %v1856, 23
        %v1858 = vsub.s32 %v1857, 127
        %v1859 = vand.u32 2147483647, %v1327
        %v1860 = vand.u32 %v1859, 8388607
        %v1861 = vor.u32 %v1860, 8388608
        %v1862 = vsub.s32 0, %v1861
        %v1863 = vadd.s32 %v1858, 1
        %vm1864 = vcmp.gt.s32.totalorder %v1863, 0
        %v1865 = vsel %vm1864, %v1863, 0
        %v1866 = vshrl.u32 %v1865, 5
        %v1867 = vand.u32 %v1865, 31
        %v1868 = vsub.s32 32, %v1867
        %v1869 = vshrl.u32 683565275, %v1868
        %v1870 = vshll.u32 683565275, %v1867
        %v1871 = vshrl.u32 2475754826, %v1868
        %v1872 = vor.u32 %v1870, %v1871
        %v1873 = vshll.u32 2475754826, %v1867
        %v1874 = vshrl.u32 2131351028, %v1868
        %v1875 = vor.u32 %v1873, %v1874
        %v1876 = vshll.u32 2131351028, %v1867
        %v1877 = vshrl.u32 2102212464, %v1868
        %v1878 = vor.u32 %v1876, %v1877
        %v1879 = vshll.u32 2102212464, %v1867
        %v1880 = vshrl.u32 920167782, %v1868
        %v1881 = vor.u32 %v1879, %v1880
        %v1882 = vshll.u32 920167782, %v1867
        %v1883 = vshrl.u32 1326507024, %v1868
        %v1884 = vor.u32 %v1882, %v1883
        %vm1885 = vcmp.lt.s32.totalorder %v1866, 1
        %vm1886 = vcmp.lt.s32.totalorder %v1866, 2
        %vm1887 = vcmp.lt.s32.totalorder %v1866, 3
        %vm1888 = vcmp.lt.s32.totalorder %v1866, 4
        %v1889 = vsel %vm1885, %v1869, %v1872
        %v1890 = vsel %vm1888, %v1878, 2102212464
        %v1891 = vsel %vm1887, %v1875, %v1890
        %v1892 = vsel %vm1886, %v1889, %v1891
        %v1893 = vsel %vm1885, %v1872, %v1875
        %v1894 = vsel %vm1888, %v1881, 920167782
        %v1895 = vsel %vm1887, %v1878, %v1894
        %v1896 = vsel %vm1886, %v1893, %v1895
        %v1897 = vsel %vm1885, %v1875, %v1878
        %v1898 = vsel %vm1888, %v1884, 1326507024
        %v1899 = vsel %vm1887, %v1881, %v1898
        %v1900 = vsel %vm1886, %v1897, %v1899
        %v1901 = vshll.u32 %v1861, 8
        %v1902 = vmul.u32.u64.compose %v1901, %v1900
        %v1903 = vextract.low.u32 %v1902
        %v1904 = vextract.high.u32 %v1902
        %v1905 = vmul.u32.u64.compose %v1901, %v1896
        %v1906 = vextract.low.u32 %v1905
        %v1907 = vextract.high.u32 %v1905
        %v1908 = vmul.u32 %v1901, %v1892
        %v1909 = vadd.s32 %v1904, %v1906
        %vm1910 = vc.u32 %v1904, %v1906
        %v1911 = vadd.s32 %v1907, 1
        %v1912 = vsel %vm1910, %v1911, %v1907
        %v1913 = vadd.s32 %v1908, %v1912
        %v1914 = vadd.s32 %v1913, 536870912
        %v1915 = vshrl.u32 %v1914, 30
        %v1916 = vshll.u32 %v1915, 30
        %v1917 = vsub.s32 %v1913, %v1916
        %vm1918 = vcmp.lt.s32.totalorder %v1917, 0
        %v1919 = vsub.s32 0, %v1917
        %v1920 = vsel %vm1918, %v1919, %v1917
        %v1921 = vclz %v1920
        %v1922 = vsub.s32 %v1921, 2
        %vm1923 = vcmp.gt.s32.totalorder 0, %v1922
        %v1924 = vsel %vm1923, 0, %v1922
        %v1925 = vsub.s32 32, %v1924
        %v1926 = vshll.u32 %v1917, %v1924
        %v1927 = vshrl.u32 %v1909, %v1925
        %v1928 = vor.u32 %v1926, %v1927
        %v1929 = vsub.s32 4294967266, %v1924
        %v1930 = vadd.s32 %v1929, 127
        %v1931 = vshll.u32 %v1930, 23
        %v1932 = vor.u32 4788187, %v1931
        %v1933 = vand.u32 2147483647, %v1932
        %v1935 = vcvt.s32.f32 %v1928
        %v1936 = vmul.f32 %v1935, %v1933
        %v1937 = vxor.u32 %v1936, 2147483648
        %v1938 = vsel %vm1855, %v1937, %v1936
        %v1939 = vsub.s32 4, %v1915
        %v1940 = vsel %vm1855, %v1939, %v1915
        %v1941 = vsel %vm1854, %v1327, %v1938
        %v1942 = vsel %vm1854, 0, %v1940
        %v1943 = vcosq.f32.pop %v1941
        %v1944 = vsinq.f32.pop %v1941
        %vm1945 = vweird.f32 %v1327
        %v1946 = vadd.s32 %v1942, 3
        %v1947 = vand.u32 %v1946, 3
        %vm1948 = vcmp.lt.s32.totalorder %v1947, 2
        %vm1949 = vcmp.eq.s32.totalorder %v1947, 0
        %v1950 = vxor.u32 %v1944, 2147483648
        %v1951 = vsel %vm1949, %v1943, %v1950
        %vm1952 = vcmp.eq.s32.totalorder %v1947, 2
        %v1953 = vxor.u32 %v1943, 2147483648
        %v1954 = vsel %vm1952, %v1953, %v1944
        %v1955 = vsel %vm1948, %v1951, %v1954
        %v1956 = vsel %vm1945, nan, %v1955
        %v1957 = vand.u32 2147483647, %v1328
        %vm1958 = vcmp.le.f32.partialorder %v1957, 0.7853982
        %vm1959 = vcmp.lt.s32.totalorder %v1328, 0
        %v1960 = vand.u32 %v1328, 2139095040
        %v1961 = vshrl.u32 %v1960, 23
        %v1962 = vsub.s32 %v1961, 127
        %v1963 = vand.u32 2147483647, %v1328
        %v1964 = vand.u32 %v1963, 8388607
        %v1965 = vor.u32 %v1964, 8388608
        %v1966 = vsub.s32 0, %v1965
        %v1967 = vadd.s32 %v1962, 1
        %vm1968 = vcmp.gt.s32.totalorder %v1967, 0
        %v1969 = vsel %vm1968, %v1967, 0
        %v1970 = vshrl.u32 %v1969, 5
        %v1971 = vand.u32 %v1969, 31
        %v1972 = vsub.s32 32, %v1971
        %v1973 = vshrl.u32 683565275, %v1972
        %v1974 = vshll.u32 683565275, %v1971
        %v1975 = vshrl.u32 2475754826, %v1972
        %v1976 = vor.u32 %v1974, %v1975
        %v1977 = vshll.u32 2475754826, %v1971
        %v1978 = vshrl.u32 2131351028, %v1972
        %v1979 = vor.u32 %v1977, %v1978
        %v1980 = vshll.u32 2131351028, %v1971
        %v1981 = vshrl.u32 2102212464, %v1972
        %v1982 = vor.u32 %v1980, %v1981
        %v1983 = vshll.u32 2102212464, %v1971
        %v1984 = vshrl.u32 920167782, %v1972
        %v1985 = vor.u32 %v1983, %v1984
        %v1986 = vshll.u32 920167782, %v1971
        %v1987 = vshrl.u32 1326507024, %v1972
        %v1988 = vor.u32 %v1986, %v1987
        %vm1989 = vcmp.lt.s32.totalorder %v1970, 1
        %vm1990 = vcmp.lt.s32.totalorder %v1970, 2
        %vm1991 = vcmp.lt.s32.totalorder %v1970, 3
        %vm1992 = vcmp.lt.s32.totalorder %v1970, 4
        %v1993 = vsel %vm1989, %v1973, %v1976
        %v1994 = vsel %vm1992, %v1982, 2102212464
        %v1995 = vsel %vm1991, %v1979, %v1994
        %v1996 = vsel %vm1990, %v1993, %v1995
        %v1997 = vsel %vm1989, %v1976, %v1979
        %v1998 = vsel %vm1992, %v1985, 920167782
        %v1999 = vsel %vm1991, %v1982, %v1998
        %v2000 = vsel %vm1990, %v1997, %v1999
        %v2001 = vsel %vm1989, %v1979, %v1982
        %v2002 = vsel %vm1992, %v1988, 1326507024
        %v2003 = vsel %vm1991, %v1985, %v2002
        %v2004 = vsel %vm1990, %v2001, %v2003
        %v2005 = vshll.u32 %v1965, 8
        %v2006 = vmul.u32.u64.compose %v2005, %v2004
        %v2007 = vextract.low.u32 %v2006
        %v2008 = vextract.high.u32 %v2006
        %v2009 = vmul.u32.u64.compose %v2005, %v2000
        %v2010 = vextract.low.u32 %v2009
        %v2011 = vextract.high.u32 %v2009
        %v2012 = vmul.u32 %v2005, %v1996
        %v2013 = vadd.s32 %v2008, %v2010
        %vm2014 = vc.u32 %v2008, %v2010
        %v2015 = vadd.s32 %v2011, 1
        %v2016 = vsel %vm2014, %v2015, %v2011
        %v2017 = vadd.s32 %v2012, %v2016
        %v2018 = vadd.s32 %v2017, 536870912
        %v2019 = vshrl.u32 %v2018, 30
        %v2020 = vshll.u32 %v2019, 30
        %v2021 = vsub.s32 %v2017, %v2020
        %vm2022 = vcmp.lt.s32.totalorder %v2021, 0
        %v2023 = vsub.s32 0, %v2021
        %v2024 = vsel %vm2022, %v2023, %v2021
        %v2025 = vclz %v2024
        %v2026 = vsub.s32 %v2025, 2
        %vm2027 = vcmp.gt.s32.totalorder 0, %v2026
        %v2028 = vsel %vm2027, 0, %v2026
        %v2029 = vsub.s32 32, %v2028
        %v2030 = vshll.u32 %v2021, %v2028
        %v2031 = vshrl.u32 %v2013, %v2029
        %v2032 = vor.u32 %v2030, %v2031
        %v2033 = vsub.s32 4294967266, %v2028
        %v2034 = vadd.s32 %v2033, 127
        %v2035 = vshll.u32 %v2034, 23
        %v2036 = vor.u32 4788187, %v2035
        %v2037 = vand.u32 2147483647, %v2036
        %v2039 = vcvt.s32.f32 %v2032
        %v2040 = vmul.f32 %v2039, %v2037
        %v2041 = vxor.u32 %v2040, 2147483648
        %v2042 = vsel %vm1959, %v2041, %v2040
        %v2043 = vsub.s32 4, %v2019
        %v2044 = vsel %vm1959, %v2043, %v2019
        %v2045 = vsel %vm1958, %v1328, %v2042
        %v2046 = vsel %vm1958, 0, %v2044
        %v2047 = vcosq.f32.pop %v2045
        %v2048 = vsinq.f32.pop %v2045
        %vm2049 = vweird.f32 %v1328
        %v2050 = vadd.s32 %v2046, 3
        %v2051 = vand.u32 %v2050, 3
        %vm2052 = vcmp.lt.s32.totalorder %v2051, 2
        %vm2053 = vcmp.eq.s32.totalorder %v2051, 0
        %v2054 = vxor.u32 %v2048, 2147483648
        %v2055 = vsel %vm2053, %v2047, %v2054
        %vm2056 = vcmp.eq.s32.totalorder %v2051, 2
        %v2057 = vxor.u32 %v2047, 2147483648
        %v2058 = vsel %vm2056, %v2057, %v2048
        %v2059 = vsel %vm2052, %v2055, %v2058
        %v2060 = vsel %vm2049, nan, %v2059
        %v2061 = vand.u32 2147483647, %v1329
        %vm2062 = vcmp.le.f32.partialorder %v2061, 0.7853982
        %vm2063 = vcmp.lt.s32.totalorder %v1329, 0
        %v2064 = vand.u32 %v1329, 2139095040
        %v2065 = vshrl.u32 %v2064, 23
        %v2066 = vsub.s32 %v2065, 127
        %v2067 = vand.u32 2147483647, %v1329
        %v2068 = vand.u32 %v2067, 8388607
        %v2069 = vor.u32 %v2068, 8388608
        %v2070 = vsub.s32 0, %v2069
        %v2071 = vadd.s32 %v2066, 1
        %vm2072 = vcmp.gt.s32.totalorder %v2071, 0
        %v2073 = vsel %vm2072, %v2071, 0
        %v2074 = vshrl.u32 %v2073, 5
        %v2075 = vand.u32 %v2073, 31
        %v2076 = vsub.s32 32, %v2075
        %v2077 = vshrl.u32 683565275, %v2076
        %v2078 = vshll.u32 683565275, %v2075
        %v2079 = vshrl.u32 2475754826, %v2076
        %v2080 = vor.u32 %v2078, %v2079
        %v2081 = vshll.u32 2475754826, %v2075
        %v2082 = vshrl.u32 2131351028, %v2076
        %v2083 = vor.u32 %v2081, %v2082
        %v2084 = vshll.u32 2131351028, %v2075
        %v2085 = vshrl.u32 2102212464, %v2076
        %v2086 = vor.u32 %v2084, %v2085
        %v2087 = vshll.u32 2102212464, %v2075
        %v2088 = vshrl.u32 920167782, %v2076
        %v2089 = vor.u32 %v2087, %v2088
        %v2090 = vshll.u32 920167782, %v2075
        %v2091 = vshrl.u32 1326507024, %v2076
        %v2092 = vor.u32 %v2090, %v2091
        %vm2093 = vcmp.lt.s32.totalorder %v2074, 1
        %vm2094 = vcmp.lt.s32.totalorder %v2074, 2
        %vm2095 = vcmp.lt.s32.totalorder %v2074, 3
        %vm2096 = vcmp.lt.s32.totalorder %v2074, 4
        %v2097 = vsel %vm2093, %v2077, %v2080
        %v2098 = vsel %vm2096, %v2086, 2102212464
        %v2099 = vsel %vm2095, %v2083, %v2098
        %v2100 = vsel %vm2094, %v2097, %v2099
        %v2101 = vsel %vm2093, %v2080, %v2083
        %v2102 = vsel %vm2096, %v2089, 920167782
        %v2103 = vsel %vm2095, %v2086, %v2102
        %v2104 = vsel %vm2094, %v2101, %v2103
        %v2105 = vsel %vm2093, %v2083, %v2086
        %v2106 = vsel %vm2096, %v2092, 1326507024
        %v2107 = vsel %vm2095, %v2089, %v2106
        %v2108 = vsel %vm2094, %v2105, %v2107
        %v2109 = vshll.u32 %v2069, 8
        %v2110 = vmul.u32.u64.compose %v2109, %v2108
        %v2111 = vextract.low.u32 %v2110
        %v2112 = vextract.high.u32 %v2110
        %v2113 = vmul.u32.u64.compose %v2109, %v2104
        %v2114 = vextract.low.u32 %v2113
        %v2115 = vextract.high.u32 %v2113
        %v2116 = vmul.u32 %v2109, %v2100
        %v2117 = vadd.s32 %v2112, %v2114
        %vm2118 = vc.u32 %v2112, %v2114
        %v2119 = vadd.s32 %v2115, 1
        %v2120 = vsel %vm2118, %v2119, %v2115
        %v2121 = vadd.s32 %v2116, %v2120
        %v2122 = vadd.s32 %v2121, 536870912
        %v2123 = vshrl.u32 %v2122, 30
        %v2124 = vshll.u32 %v2123, 30
        %v2125 = vsub.s32 %v2121, %v2124
        %vm2126 = vcmp.lt.s32.totalorder %v2125, 0
        %v2127 = vsub.s32 0, %v2125
        %v2128 = vsel %vm2126, %v2127, %v2125
        %v2129 = vclz %v2128
        %v2130 = vsub.s32 %v2129, 2
        %vm2131 = vcmp.gt.s32.totalorder 0, %v2130
        %v2132 = vsel %vm2131, 0, %v2130
        %v2133 = vsub.s32 32, %v2132
        %v2134 = vshll.u32 %v2125, %v2132
        %v2135 = vshrl.u32 %v2117, %v2133
        %v2136 = vor.u32 %v2134, %v2135
        %v2137 = vsub.s32 4294967266, %v2132
        %v2138 = vadd.s32 %v2137, 127
        %v2139 = vshll.u32 %v2138, 23
        %v2140 = vor.u32 4788187, %v2139
        %v2141 = vand.u32 2147483647, %v2140
        %v2143 = vcvt.s32.f32 %v2136
        %v2144 = vmul.f32 %v2143, %v2141
        %v2145 = vxor.u32 %v2144, 2147483648
        %v2146 = vsel %vm2063, %v2145, %v2144
        %v2147 = vsub.s32 4, %v2123
        %v2148 = vsel %vm2063, %v2147, %v2123
        %v2149 = vsel %vm2062, %v1329, %v2146
        %v2150 = vsel %vm2062, 0, %v2148
        %v2151 = vcosq.f32.pop %v2149
        %v2152 = vsinq.f32.pop %v2149
        %vm2153 = vweird.f32 %v1329
        %v2154 = vadd.s32 %v2150, 3
        %v2155 = vand.u32 %v2154, 3
        %vm2156 = vcmp.lt.s32.totalorder %v2155, 2
        %vm2157 = vcmp.eq.s32.totalorder %v2155, 0
        %v2158 = vxor.u32 %v2152, 2147483648
        %v2159 = vsel %vm2157, %v2151, %v2158
        %vm2160 = vcmp.eq.s32.totalorder %v2155, 2
        %v2161 = vxor.u32 %v2151, 2147483648
        %v2162 = vsel %vm2160, %v2161, %v2152
        %v2163 = vsel %vm2156, %v2159, %v2162
        %v2164 = vsel %vm2153, nan, %v2163
        %v2165 = vsel %vm1332, %v1322, %v1436
        %v2166 = vsel %vm1332, %v1323, %v1540
        %v2167 = vsel %vm1332, %v1324, %v1644
        %v2168 = vsel %vm1332, %v1325, %v1748
        %v2169 = vsel %vm1332, %v1326, %v1852
        %v2170 = vsel %vm1332, %v1327, %v1956
        %v2171 = vsel %vm1332, %v1328, %v2060
        %v2172 = vsel %vm1332, %v1329, %v2164
        %v2189 = vunpack.c.l.b16 %v1215
        %v2190 = vunpack.c.l.b16 %v1216
        %v2191 = vunpack.c.l.b16 %v1217
        %v2192 = vunpack.c.l.b16 %v1218
        %v2193 = vunpack.c.l.b16 %v1219
        %v2194 = vunpack.c.l.b16 %v1220
        %v2195 = vunpack.c.l.b16 %v1221
        %v2196 = vunpack.c.l.b16 %v1222
        %v2197 = vunpack.c.l.b16 %v1223
        %v2198 = vunpack.c.l.b16 %v1224
        %v2199 = vunpack.c.l.b16 %v1225
        %v2200 = vunpack.c.l.b16 %v1226
        %v2201 = vunpack.c.l.b16 %v1227
        %v2202 = vunpack.c.l.b16 %v1228
        %v2203 = vunpack.c.l.b16 %v1229
        %v2204 = vunpack.c.l.b16 %v1230
        %v2205 = vpack.c.b16 %v2190, %v2189
        %v2206 = vpack.c.b16 %v2192, %v2191
        %v2207 = vpack.c.b16 %v2194, %v2193
        %v2208 = vpack.c.b16 %v2196, %v2195
        %v2209 = vpack.c.b16 %v2198, %v2197
        %v2210 = vpack.c.b16 %v2200, %v2199
        %v2211 = vpack.c.b16 %v2202, %v2201
        %v2212 = vpack.c.b16 %v2204, %v2203
        %2221 = vmatprep.subr.bf16.mxu0 0
        %2222 = vmatpush1.bf16.msra.mxu0 %v2205
        %2223 = vmatprep.subr.bf16.mxu0 0
        %2224 = vmatpush1.bf16.msra.mxu0 %v2206
        %2225 = vmatprep.subr.bf16.mxu0 0
        %2226 = vmatpush1.bf16.msra.mxu0 %v2207
        %2227 = vmatprep.subr.bf16.mxu0 0
        %2228 = vmatpush1.bf16.msra.mxu0 %v2208
        %2229 = vmatprep.subr.bf16.mxu0 0
        %2230 = vmatpush1.bf16.msra.mxu0 %v2209
        %2231 = vmatprep.subr.bf16.mxu0 0
        %2232 = vmatpush1.bf16.msra.mxu0 %v2210
        %2233 = vmatprep.subr.bf16.mxu0 0
        %2234 = vmatpush1.bf16.msra.mxu0 %v2211
        %2235 = vmatprep.subr.bf16.mxu0 0
        %2236 = vmatpush1.bf16.msra.mxu0 %v2212
        %2237 = vmatprep.subr.bf16.mxu0 0
        %2238 = vmatpush1.bf16.msra.mxu0 0
        %2239 = vmatprep.subr.bf16.mxu0 0
        %2240 = vmatpush1.bf16.msra.mxu0 0
        %2241 = vmatprep.subr.bf16.mxu0 0
        %2242 = vmatpush1.bf16.msra.mxu0 0
        %2243 = vmatprep.subr.bf16.mxu0 0
        %2244 = vmatpush1.bf16.msra.mxu0 0
        %2245 = vmatprep.subr.bf16.mxu0 0
        %2246 = vmatpush1.bf16.msra.mxu0 0
        %2247 = vmatprep.subr.bf16.mxu0 0
        %2248 = vmatpush1.bf16.msra.mxu0 0
        %2249 = vmatprep.subr.bf16.mxu0 0
        %2250 = vmatpush1.bf16.msra.mxu0 0
        %2251 = vmatprep.subr.bf16.mxu0 0
        %2252 = vmatpush1.bf16.msra.mxu0 0
        %2253 = vmatprep.mubr.bf16.mxu0 0
        %2254 = vmatmul.mubr.bf16.gmra.mrb[0].mxu0 %v1211
        %v2255 = vpop.f32.mrb[0].mxu0
        %v2256 = vadd.f32 %v2165, %v2255
        %v2257 = vpop.f32.mrb[0].mxu0
        %v2258 = vpop.f32.mrb[0].mxu0
        %v2259 = vadd.f32 %v2166, %v2258
        %v2260 = vpop.f32.mrb[0].mxu0
        %2261 = vmatprep.mubr.bf16.mxu0 0
        %2262 = vmatmul.mubr.bf16.gmra.mrb[0].mxu0 %v1212
        %v2263 = vpop.f32.mrb[0].mxu0
        %v2264 = vadd.f32 %v2167, %v2263
        %v2265 = vpop.f32.mrb[0].mxu0
        %v2266 = vpop.f32.mrb[0].mxu0
        %v2267 = vadd.f32 %v2168, %v2266
        %v2268 = vpop.f32.mrb[0].mxu0
        %2269 = vmatprep.mubr.bf16.mxu0 0
        %2270 = vmatmul.mubr.bf16.gmra.mrb[0].mxu0 %v1213
        %v2271 = vpop.f32.mrb[0].mxu0
        %v2272 = vadd.f32 %v2169, %v2271
        %v2273 = vpop.f32.mrb[0].mxu0
        %v2274 = vpop.f32.mrb[0].mxu0
        %v2275 = vadd.f32 %v2170, %v2274
        %v2276 = vpop.f32.mrb[0].mxu0
        %2277 = vmatprep.mubr.bf16.mxu0 0
        %2278 = vmatmul.mubr.bf16.gmra.mrb[0].mxu0 %v1214
        %v2279 = vpop.f32.mrb[0].mxu0
        %v2280 = vadd.f32 %v2171, %v2279
        %v2281 = vpop.f32.mrb[0].mxu0
        %v2282 = vpop.f32.mrb[0].mxu0
        %v2283 = vadd.f32 %v2172, %v2282
        %v2284 = vpop.f32.mrb[0].mxu0
        %2285 = vdwg.mxu0
        %2286 = vst [vmem:[%s164] sm:$0xff] %v2256
        %2287 = vst [vmem:[%s164 + $0x8] sm:$0xff] %v2259
        %2288 = vst [vmem:[%s164 + $0x10] sm:$0xff] %v2264
        %2289 = vst [vmem:[%s164 + $0x18] sm:$0xff] %v2267
        %2290 = vst [vmem:[%s164 + $0x20] sm:$0xff] %v2272
        %2291 = vst [vmem:[%s164 + $0x28] sm:$0xff] %v2275
        %2292 = vst [vmem:[%s164 + $0x30] sm:$0xff] %v2280
        %2293 = vst [vmem:[%s164 + $0x38] sm:$0xff] %v2283
        %s2294 = sand.u32 %s93, 1
        %s2295 = scalar_lea.sflag [#allocation3], %s2294
        %s2296 = sand.u32 %s93, 1
        %s2297 = smul.addr %s2296, 64
        %s2298 = scalar_lea.vmem [#allocation2], %s2297
        // Predicated region
        $region33: #{tpu_custom_call.1} parent=31 // pred_check
          %p2299 = pneg %p103
        $region34: #{tpu_custom_call.1} parent=31 // pred_check_branch
          %2301 = sbr.rel (%p2299) target = $region36
        $region35: #{tpu_custom_call.1} parent=31 // pred_region
          %s2302 = smul.u32 8, %s17
          %s2304 = ssub.s32 1024, 1024
          %2305 = vsyncadd %s2295, %s2304
          %s2306 = smul.addr %s2302, 128
          %s2307 = scalar_lea.hbm %s3, %s2306
          %s2308 = sshll.u32 %s2298, 4
          %s2309 = int_to_ptr.vmem [resolvable:$true] %s2308
          %2314 = dma.vmem_to_hbm [thread:$0]  %s2309, 1024, %s2307, %s2295, 128, 128, 8
        $region36: #{tpu_custom_call.1} parent=31 // pred_fallthru
          _
      $region32: #{tpu_custom_call.1} parent=5 // pred_fallthru
        _
      %p2315 = scmp.le.s32.totalorder 2, %s12
      // Predicated region
      $region37: #{tpu_custom_call.1} parent=5 // pred_check
        %p2316 = pneg %p2315
      $region38: #{tpu_custom_call.1} parent=5 // pred_check_branch
        %2318 = sbr.rel (%p2316) target = $region40
      $region39: #{tpu_custom_call.1} parent=5 // pred_region
        %s2319 = ssub.s32 %s12, 2
        // Predicated region
        $region41: #{tpu_custom_call.1} parent=39 // pred_check
          %p2320 = pneg %p109
        $region42: #{tpu_custom_call.1} parent=39 // pred_check_branch
          %2322 = sbr.rel (%p2320) target = $region44
        $region43: #{tpu_custom_call.1} parent=39 // pred_region
          %s2323 = sand.u32 %s94, 1
          %s2324 = scalar_lea.sflag [#allocation3], %s2323
          %s2325 = sand.u32 %s94, 1
          %s2326 = smul.addr %s2325, 64
          %s2327 = scalar_lea.vmem [#allocation2], %s2326
          %2328 = dma.done %s2324, 1024
        $region44: #{tpu_custom_call.1} parent=39 // pred_fallthru
          _
      $region40: #{tpu_custom_call.1} parent=5 // pred_fallthru
        _
    $region6: #{tpu_custom_call.1} parent=1 // loop_footer
      %s16 = sadd.s32 1, %s12
    $region7: #{tpu_custom_call.1} parent=1 // loop_footer_branch
      %11 = sbr.rel target = $region3
    $region8: #{tpu_custom_call.1} parent=1 // loop_exit
      _
    %2329 = vsyncpa [#allocation3], 1
    %s2330 = scalar_lea.sflag [#allocation3], 1
    %2331 = vsyncpa %s2330, 1

</llo_original>
